<compile_context>
chip_gen: v5e
topology: v5e:2x2
jax: 0.10.0
libtpu: 0.0.40
codegen_flags: <defaults>
</compile_context>

<pallas_src>
import functools

import numpy as np

import jax
import jax.numpy as jnp
from jax.experimental import pallas as pl
from jax.experimental.pallas import tpu as pltpu

EPS = 1e-5


# ----------------------------------------------------------------------------
# Fused forward kernel: one grid step == one batch tile, full network in VMEM.
# ----------------------------------------------------------------------------
def _cnn_fused_kernel(x_ref, sel1_ref, sel2_ref,
                      w1_ref, b1_ref,
                      w1a_ref, b1a_ref, w1b_ref, b1b_ref,
                      w2a_ref, b2a_ref, w2b_ref, b2b_ref,
                      fc1w_ref, fc1b_ref, fc2w_ref, fc2b_ref,
                      o_ref, *, bt):
    f32 = jnp.float32
    sel1 = sel1_ref[...]            # (3*63, 126) 0/1 gather for layer1 stride-2 taps
    sel2 = sel2_ref[...]            # (3*32, 63)  0/1 gather for layer2 stride-2 taps
    w1, b1 = w1_ref[...], b1_ref[...]
    w1a, b1a = w1a_ref[...], b1a_ref[...]
    w1b, b1b = w1b_ref[...], b1b_ref[...]
    w2a, b2a = w2a_ref[...], b2a_ref[...]
    w2b, b2b = w2b_ref[...], b2b_ref[...]
    fc1w, fc1b = fc1w_ref[...], fc1b_ref[...]
    fc2w, fc2b = fc2w_ref[...], fc2b_ref[...]

    x_all = x_ref[...]              # (bt, 126, 40)
    outs = []
    for bi in range(bt):            # static unroll over the batch tile
        x = x_all[bi]               # (126, 40)

        # conv1: k=3, s=1, p=1  (im2col -> single 120-deep matmul) + BN + ReLU
        z40 = jnp.zeros((1, 40), f32)
        xp = jnp.concatenate([z40, x, z40], axis=0)                          # (128, 40)
        cat = jnp.concatenate([xp[0:126], xp[1:127], xp[2:128]], axis=1)     # (126, 120)
        h1 = jnp.maximum(jnp.dot(cat, w1, preferred_element_type=f32) + b1, 0.0)  # (126, 24)

        # ---- layer1: ResBlock(24 -> 32, stride 2) ----
        # stage A: conv_a (k=3, s=2, p=1) and 1x1 skip share input -> one matmul.
        g = jnp.dot(sel1, h1, preferred_element_type=f32)                    # (189, 24)
        cat = jnp.concatenate([g[0:63], g[63:126], g[126:189]], axis=1)      # (63, 72)
        y = jnp.dot(cat, w1a, preferred_element_type=f32) + b1a              # (63, 64)
        m = jnp.maximum(y[:, 0:32], 0.0)                                     # main path (ReLU)
        sk = y[:, 32:64]                                                     # skip path (no ReLU)
        # stage B: conv_b (k=3, s=1, p=1) + BN, add skip, ReLU
        z32 = jnp.zeros((1, 32), f32)
        mp = jnp.concatenate([z32, m, z32], axis=0)                          # (65, 32)
        cat = jnp.concatenate([mp[0:63], mp[1:64], mp[2:65]], axis=1)        # (63, 96)
        h2 = jnp.maximum(
            jnp.dot(cat, w1b, preferred_element_type=f32) + b1b + sk, 0.0)   # (63, 32)

        # ---- layer2: ResBlock(32 -> 48, stride 2) ----
        g = jnp.dot(sel2, h2, preferred_element_type=f32)                    # (96, 32)
        cat = jnp.concatenate([g[0:32], g[32:64], g[64:96]], axis=1)         # (32, 96)
        y = jnp.dot(cat, w2a, preferred_element_type=f32) + b2a              # (32, 96)
        m = jnp.maximum(y[:, 0:48], 0.0)
        sk = y[:, 48:96]
        z48 = jnp.zeros((1, 48), f32)
        mp = jnp.concatenate([z48, m, z48], axis=0)                          # (34, 48)
        cat = jnp.concatenate([mp[0:32], mp[1:33], mp[2:34]], axis=1)        # (32, 144)
        h3 = jnp.maximum(
            jnp.dot(cat, w2b, preferred_element_type=f32) + b2b + sk, 0.0)   # (32, 48)

        # ---- head: AdaptiveAvgPool1d(1) + Linear(48,64) + ReLU + Linear(64,32) ----
        pooled = jnp.mean(h3, axis=0, keepdims=True)                         # (1, 48)
        hf = jnp.maximum(jnp.dot(pooled, fc1w, preferred_element_type=f32) + fc1b, 0.0)
        outs.append(jnp.dot(hf, fc2w, preferred_element_type=f32) + fc2b)    # (1, 32)

    o_ref[...] = jnp.concatenate(outs, axis=0)                               # (bt, 32)


# ----------------------------------------------------------------------------
# Constant 0/1 gather matrices for the stride-2 convs (built once at trace time).
# Row k*l_out + o selects input row (stride*o + k - pad); out-of-range rows are
# all-zero (they are exactly the conv's zero padding).
# ----------------------------------------------------------------------------
def _strided_tap_selector(l_in, l_out, stride, ksize, pad):
    s = np.zeros((ksize * l_out, l_in), np.float32)
    for k in range(ksize):
        for o in range(l_out):
            t = stride * o + k - pad
            if 0 <= t < l_in:
                s[k * l_out + o, t] = 1.0
    return jnp.asarray(s)


def _full_block_spec(arr):
    nd = arr.ndim
    return pl.BlockSpec(arr.shape, lambda i, _nd=nd: (0,) * _nd)


def cnn_forward(x, p):
    """x: (B, 126, 40) float32 -> (B, 32) float32. `p` = pack_params(init_params(...))."""
    B, L, Cin = x.shape
    assert (L, Cin) == (126, 40), (L, Cin)

    bt = B if B <= 8 else 8                   # batch tile (keeps output block 8-aligned when tiled)
    bp = -(-B // bt) * bt
    if bp != B:
        x = jnp.concatenate([x, jnp.zeros((bp - B, L, Cin), x.dtype)], axis=0)

    sel1 = _strided_tap_selector(l_in=126, l_out=63, stride=2, ksize=3, pad=1)
    sel2 = _strided_tap_selector(l_in=63, l_out=32, stride=2, ksize=3, pad=1)

    consts = [sel1, sel2,
              p["w1"], p["b1"],
              p["w1a"], p["b1a"], p["w1b"], p["b1b"],
              p["w2a"], p["b2a"], p["w2b"], p["b2b"],
              p["fc1_w"], p["fc1_b"], p["fc2_w"], p["fc2_b"]]

    out = pl.pallas_call(
        functools.partial(_cnn_fused_kernel, bt=bt),
        grid=(bp // bt,),
        in_specs=[pl.BlockSpec((bt, 126, 40), lambda i: (i, 0, 0))]
                 + [_full_block_spec(c) for c in consts],
        out_specs=pl.BlockSpec((bt, 32), lambda i: (i, 0)),
        out_shape=jax.ShapeDtypeStruct((bp, 32), jnp.float32),
        compiler_params=pltpu.CompilerParams(dimension_semantics=("parallel",)),
    )(x, *consts)
    return out[:B]


# ----------------------------------------------------------------------------
# Deterministic synthetic parameters (PyTorch layouts), BN folded, then packed
# into the fused-kernel layout (im2col-reshaped weights, branch-concat blocks).
# ----------------------------------------------------------------------------
def _init_conv_bn(key, c_in, c_out, ksize):
    kw, kb, kg, kbe, km, kv = jax.random.split(key, 6)
    w = 0.1 * jax.random.normal(kw, (c_out, c_in, ksize), jnp.float32)   # torch Conv1d layout
    b = 0.1 * jax.random.normal(kb, (c_out,), jnp.float32)
    gamma = jax.random.uniform(kg, (c_out,), jnp.float32, 0.5, 1.5)
    beta = 0.1 * jax.random.normal(kbe, (c_out,), jnp.float32)
    mean = 0.1 * jax.random.normal(km, (c_out,), jnp.float32)
    var = jax.random.uniform(kv, (c_out,), jnp.float32, 0.5, 1.5)
    scale = gamma / jnp.sqrt(var + EPS)
    w_f = w * scale[:, None, None]
    b_f = (b - mean) * scale + beta
    return jnp.transpose(w_f, (2, 1, 0)), b_f          # (K, Cin, Cout), (Cout,)


def _init_linear(key, d_in, d_out):
    kw, kb = jax.random.split(key)
    w = 0.1 * jax.random.normal(kw, (d_out, d_in), jnp.float32)          # torch Linear layout
    b = 0.1 * jax.random.normal(kb, (d_out,), jnp.float32)
    return w.T, b                                      # (d_in, d_out), (d_out,)


def init_params(key):
    keys = jax.random.split(key, 9)
    p = {}
    p["conv1_w"], p["conv1_b"] = _init_conv_bn(keys[0], 40, 24, 3)
    p["l1_a_w"], p["l1_a_b"] = _init_conv_bn(keys[1], 24, 32, 3)
    p["l1_b_w"], p["l1_b_b"] = _init_conv_bn(keys[2], 32, 32, 3)
    p["l1_s_w"], p["l1_s_b"] = _init_conv_bn(keys[3], 24, 32, 1)
    p["l2_a_w"], p["l2_a_b"] = _init_conv_bn(keys[4], 32, 48, 3)
    p["l2_b_w"], p["l2_b_b"] = _init_conv_bn(keys[5], 48, 48, 3)
    p["l2_s_w"], p["l2_s_b"] = _init_conv_bn(keys[6], 32, 48, 1)
    p["fc1_w"], p["fc1_b"] = _init_linear(keys[7], 48, 64)
    p["fc2_w"], p["fc2_b"] = _init_linear(keys[8], 64, 32)
    return p


def _pack_branch(wa, ba, ws, bs):
    """Concat conv-a (3,Cin,Cm) and 1x1 skip (1,Cin,Cs) along Cout.

    The skip conv reads input row 2o, which is tap k=1 of the (pad=1, stride=2)
    main conv, so its weights occupy the k=1 row-block; k=0/k=2 get zeros.
    """
    ksize, c_in, c_m = wa.shape
    c_s = ws.shape[-1]
    blocks = []
    for k in range(ksize):
        skip_blk = ws[0] if k == 1 else jnp.zeros((c_in, c_s), wa.dtype)
        blocks.append(jnp.concatenate([wa[k], skip_blk], axis=1))
    w_cat = jnp.concatenate(blocks, axis=0)                  # (3*Cin, Cm+Cs)
    b_cat = jnp.concatenate([ba, bs]).reshape(1, c_m + c_s)
    return w_cat, b_cat


def pack_params(p):
    kp = {}
    kp["w1"] = p["conv1_w"].reshape(3 * 40, 24)
    kp["b1"] = p["conv1_b"].reshape(1, 24)
    kp["w1a"], kp["b1a"] = _pack_branch(p["l1_a_w"], p["l1_a_b"], p["l1_s_w"], p["l1_s_b"])
    kp["w1b"] = p["l1_b_w"].reshape(3 * 32, 32)
    kp["b1b"] = p["l1_b_b"].reshape(1, 32)
    kp["w2a"], kp["b2a"] = _pack_branch(p["l2_a_w"], p["l2_a_b"], p["l2_s_w"], p["l2_s_b"])
    kp["w2b"] = p["l2_b_w"].reshape(3 * 48, 48)
    kp["b2b"] = p["l2_b_b"].reshape(1, 48)
    kp["fc1_w"] = p["fc1_w"]
    kp["fc1_b"] = p["fc1_b"].reshape(1, 64)
    kp["fc2_w"] = p["fc2_w"]
    kp["fc2_b"] = p["fc2_b"].reshape(1, 32)
    return kp


# ----------------------------------------------------------------------------
# Pure-JAX reference (same folded eval-mode BN) for a numerical sanity check.
# ----------------------------------------------------------------------------
def _conv1d_ref(x, w, b, stride, pad):
    out = jax.lax.conv_general_dilated(
        x, w, window_strides=(stride,), padding=[(pad, pad)],
        dimension_numbers=("NHC", "HIO", "NHC"),
        precision=jax.lax.Precision.HIGHEST)
    return out + b


def cnn_reference(x, p):
    h = jax.nn.relu(_conv1d_ref(x, p["conv1_w"], p["conv1_b"], 1, 1))
    m = jax.nn.relu(_conv1d_ref(h, p["l1_a_w"], p["l1_a_b"], 2, 1))
    s = _conv1d_ref(h, p["l1_s_w"], p["l1_s_b"], 2, 0)
    h = jax.nn.relu(_conv1d_ref(m, p["l1_b_w"], p["l1_b_b"], 1, 1) + s)
    m = jax.nn.relu(_conv1d_ref(h, p["l2_a_w"], p["l2_a_b"], 2, 1))
    s = _conv1d_ref(h, p["l2_s_w"], p["l2_s_b"], 2, 0)
    h = jax.nn.relu(_conv1d_ref(m, p["l2_b_w"], p["l2_b_b"], 1, 1) + s)
    pooled = jnp.mean(h, axis=1)
    z = jax.nn.relu(pooled @ p["fc1_w"] + p["fc1_b"])
    return z @ p["fc2_w"] + p["fc2_b"]


if __name__ == "__main__":
    key = jax.random.PRNGKey(0)
    k_param, k_x = jax.random.split(key)
    raw_params = init_params(k_param)
    params = pack_params(raw_params)
    x = jax.random.normal(k_x, (2, 126, 40), jnp.float32)   # (batch, 126, 40) as in the docstring

    out = jax.jit(cnn_forward)(x, params)
    out = jax.block_until_ready(out)
    assert out.shape == (2, 32), out.shape
    assert out.dtype == jnp.float32

    ref = jax.block_until_ready(cnn_reference(x, raw_params))
    err = float(jnp.max(jnp.abs(out - ref)))
    assert err < 3e-2, f"kernel vs reference mismatch: max abs err = {err}"
    print("KERNEL_OK")
</pallas_src>

<mosaic_0001>
module attributes {stable_mosaic.version = 11 : i64} {
  func.func @_cnn_fused_kernel(%arg0: i32, %arg1: memref<2x126x40xf32, #tpu.memory_space<vmem>>, %arg2: memref<189x126xf32, #tpu.memory_space<vmem>>, %arg3: memref<96x63xf32, #tpu.memory_space<vmem>>, %arg4: memref<120x24xf32, #tpu.memory_space<vmem>>, %arg5: memref<1x24xf32, #tpu.memory_space<vmem>>, %arg6: memref<72x64xf32, #tpu.memory_space<vmem>>, %arg7: memref<1x64xf32, #tpu.memory_space<vmem>>, %arg8: memref<96x32xf32, #tpu.memory_space<vmem>>, %arg9: memref<1x32xf32, #tpu.memory_space<vmem>>, %arg10: memref<96x96xf32, #tpu.memory_space<vmem>>, %arg11: memref<1x96xf32, #tpu.memory_space<vmem>>, %arg12: memref<144x48xf32, #tpu.memory_space<vmem>>, %arg13: memref<1x48xf32, #tpu.memory_space<vmem>>, %arg14: memref<48x64xf32, #tpu.memory_space<vmem>>, %arg15: memref<1x64xf32, #tpu.memory_space<vmem>>, %arg16: memref<64x32xf32, #tpu.memory_space<vmem>>, %arg17: memref<1x32xf32, #tpu.memory_space<vmem>>, %arg18: memref<2x32xf32, #tpu.memory_space<vmem>>) attributes {dimension_semantics = [#tpu.dimension_semantics<parallel>], iteration_bounds = array<i64: 1>, scalar_prefetch = 0 : i64, scratch_operands = 0 : i64, tpu.core_type = #tpu.core_type<tc>, window_params = [{transform_indices = @transform_0, window_bounds = array<i64: 2, 126, 40>}, {pipeline_mode = #tpu.pipeline_mode<synchronous>, transform_indices = @transform_1, window_bounds = array<i64: 189, 126>}, {pipeline_mode = #tpu.pipeline_mode<synchronous>, transform_indices = @transform_2, window_bounds = array<i64: 96, 63>}, {pipeline_mode = #tpu.pipeline_mode<synchronous>, transform_indices = @transform_3, window_bounds = array<i64: 120, 24>}, {pipeline_mode = #tpu.pipeline_mode<synchronous>, transform_indices = @transform_4, window_bounds = array<i64: 1, 24>}, {pipeline_mode = #tpu.pipeline_mode<synchronous>, transform_indices = @transform_5, window_bounds = array<i64: 72, 64>}, {pipeline_mode = #tpu.pipeline_mode<synchronous>, transform_indices = @transform_6, window_bounds = array<i64: 1, 64>}, {pipeline_mode = #tpu.pipeline_mode<synchronous>, transform_indices = @transform_7, window_bounds = array<i64: 96, 32>}, {pipeline_mode = #tpu.pipeline_mode<synchronous>, transform_indices = @transform_8, window_bounds = array<i64: 1, 32>}, {pipeline_mode = #tpu.pipeline_mode<synchronous>, transform_indices = @transform_9, window_bounds = array<i64: 96, 96>}, {pipeline_mode = #tpu.pipeline_mode<synchronous>, transform_indices = @transform_10, window_bounds = array<i64: 1, 96>}, {pipeline_mode = #tpu.pipeline_mode<synchronous>, transform_indices = @transform_11, window_bounds = array<i64: 144, 48>}, {pipeline_mode = #tpu.pipeline_mode<synchronous>, transform_indices = @transform_12, window_bounds = array<i64: 1, 48>}, {pipeline_mode = #tpu.pipeline_mode<synchronous>, transform_indices = @transform_13, window_bounds = array<i64: 48, 64>}, {pipeline_mode = #tpu.pipeline_mode<synchronous>, transform_indices = @transform_14, window_bounds = array<i64: 1, 64>}, {pipeline_mode = #tpu.pipeline_mode<synchronous>, transform_indices = @transform_15, window_bounds = array<i64: 64, 32>}, {pipeline_mode = #tpu.pipeline_mode<synchronous>, transform_indices = @transform_16, window_bounds = array<i64: 1, 32>}, {transform_indices = @transform_17, window_bounds = array<i64: 2, 32>}]} {
    %c0 = arith.constant 0 : index
    %c0_0 = arith.constant 0 : index
    %0 = vector.load %arg2[%c0, %c0_0] : memref<189x126xf32, #tpu.memory_space<vmem>>, vector<189x126xf32>
    %c0_1 = arith.constant 0 : index
    %c0_2 = arith.constant 0 : index
    %1 = vector.load %arg3[%c0_1, %c0_2] : memref<96x63xf32, #tpu.memory_space<vmem>>, vector<96x63xf32>
    %c0_3 = arith.constant 0 : index
    %c0_4 = arith.constant 0 : index
    %2 = vector.load %arg4[%c0_3, %c0_4] : memref<120x24xf32, #tpu.memory_space<vmem>>, vector<120x24xf32>
    %c0_5 = arith.constant 0 : index
    %c0_6 = arith.constant 0 : index
    %3 = vector.load %arg5[%c0_5, %c0_6] : memref<1x24xf32, #tpu.memory_space<vmem>>, vector<1x24xf32>
    %c0_7 = arith.constant 0 : index
    %c0_8 = arith.constant 0 : index
    %4 = vector.load %arg6[%c0_7, %c0_8] : memref<72x64xf32, #tpu.memory_space<vmem>>, vector<72x64xf32>
    %c0_9 = arith.constant 0 : index
    %c0_10 = arith.constant 0 : index
    %5 = vector.load %arg7[%c0_9, %c0_10] : memref<1x64xf32, #tpu.memory_space<vmem>>, vector<1x64xf32>
    %c0_11 = arith.constant 0 : index
    %c0_12 = arith.constant 0 : index
    %6 = vector.load %arg8[%c0_11, %c0_12] : memref<96x32xf32, #tpu.memory_space<vmem>>, vector<96x32xf32>
    %c0_13 = arith.constant 0 : index
    %c0_14 = arith.constant 0 : index
    %7 = vector.load %arg9[%c0_13, %c0_14] : memref<1x32xf32, #tpu.memory_space<vmem>>, vector<1x32xf32>
    %c0_15 = arith.constant 0 : index
    %c0_16 = arith.constant 0 : index
    %8 = vector.load %arg10[%c0_15, %c0_16] : memref<96x96xf32, #tpu.memory_space<vmem>>, vector<96x96xf32>
    %c0_17 = arith.constant 0 : index
    %c0_18 = arith.constant 0 : index
    %9 = vector.load %arg11[%c0_17, %c0_18] : memref<1x96xf32, #tpu.memory_space<vmem>>, vector<1x96xf32>
    %c0_19 = arith.constant 0 : index
    %c0_20 = arith.constant 0 : index
    %10 = vector.load %arg12[%c0_19, %c0_20] : memref<144x48xf32, #tpu.memory_space<vmem>>, vector<144x48xf32>
    %c0_21 = arith.constant 0 : index
    %c0_22 = arith.constant 0 : index
    %11 = vector.load %arg13[%c0_21, %c0_22] : memref<1x48xf32, #tpu.memory_space<vmem>>, vector<1x48xf32>
    %c0_23 = arith.constant 0 : index
    %c0_24 = arith.constant 0 : index
    %12 = vector.load %arg14[%c0_23, %c0_24] : memref<48x64xf32, #tpu.memory_space<vmem>>, vector<48x64xf32>
    %c0_25 = arith.constant 0 : index
    %c0_26 = arith.constant 0 : index
    %13 = vector.load %arg15[%c0_25, %c0_26] : memref<1x64xf32, #tpu.memory_space<vmem>>, vector<1x64xf32>
    %c0_27 = arith.constant 0 : index
    %c0_28 = arith.constant 0 : index
    %14 = vector.load %arg16[%c0_27, %c0_28] : memref<64x32xf32, #tpu.memory_space<vmem>>, vector<64x32xf32>
    %c0_29 = arith.constant 0 : index
    %c0_30 = arith.constant 0 : index
    %15 = vector.load %arg17[%c0_29, %c0_30] : memref<1x32xf32, #tpu.memory_space<vmem>>, vector<1x32xf32>
    %c0_31 = arith.constant 0 : index
    %c0_32 = arith.constant 0 : index
    %c0_33 = arith.constant 0 : index
    %16 = vector.load %arg1[%c0_31, %c0_32, %c0_33] : memref<2x126x40xf32, #tpu.memory_space<vmem>>, vector<2x126x40xf32>
    %17 = vector.extract_strided_slice %16 {offsets = [0, 0, 0], sizes = [1, 126, 40], strides = [1, 1, 1]} : vector<2x126x40xf32> to vector<1x126x40xf32>
    %18 = vector.shape_cast %17 : vector<1x126x40xf32> to vector<126x40xf32>
    %cst = arith.constant 0.000000e+00 : f32
    %19 = vector.broadcast %cst : f32 to vector<1x40xf32>
    %20 = tpu.concatenate %19, %18, %19 in 0 : vector<1x40xf32>, vector<126x40xf32>, vector<1x40xf32> -> vector<128x40xf32>
    %21 = vector.extract_strided_slice %20 {offsets = [0, 0], sizes = [126, 40], strides = [1, 1]} : vector<128x40xf32> to vector<126x40xf32>
    %22 = vector.extract_strided_slice %20 {offsets = [1, 0], sizes = [126, 40], strides = [1, 1]} : vector<128x40xf32> to vector<126x40xf32>
    %23 = vector.extract_strided_slice %20 {offsets = [2, 0], sizes = [126, 40], strides = [1, 1]} : vector<128x40xf32> to vector<126x40xf32>
    %24 = tpu.concatenate %21, %22, %23 in 1 : vector<126x40xf32>, vector<126x40xf32>, vector<126x40xf32> -> vector<126x120xf32>
    %cst_34 = arith.constant dense<0.000000e+00> : vector<126x24xf32>
    %25 = tpu.matmul %24, %2, %cst_34 {dimension_numbers = #tpu.dot_dimension_numbers<[1], [0], [0], [1], [0, 0, 1, 1], [], []>} : vector<126x120xf32>, vector<120x24xf32>, vector<126x24xf32> -> vector<126x24xf32>
    %26 = vector.broadcast %3 : vector<1x24xf32> to vector<126x24xf32>
    %27 = arith.addf %25, %26 : vector<126x24xf32>
    %cst_35 = arith.constant 0.000000e+00 : f32
    %28 = vector.broadcast %cst_35 : f32 to vector<126x24xf32>
    %29 = arith.maximumf %27, %28 : vector<126x24xf32>
    %cst_36 = arith.constant dense<0.000000e+00> : vector<189x24xf32>
    %30 = tpu.matmul %0, %29, %cst_36 {dimension_numbers = #tpu.dot_dimension_numbers<[1], [0], [0], [1], [0, 0, 1, 1], [], []>} : vector<189x126xf32>, vector<126x24xf32>, vector<189x24xf32> -> vector<189x24xf32>
    %31 = vector.extract_strided_slice %30 {offsets = [0, 0], sizes = [63, 24], strides = [1, 1]} : vector<189x24xf32> to vector<63x24xf32>
    %32 = vector.extract_strided_slice %30 {offsets = [63, 0], sizes = [63, 24], strides = [1, 1]} : vector<189x24xf32> to vector<63x24xf32>
    %33 = vector.extract_strided_slice %30 {offsets = [126, 0], sizes = [63, 24], strides = [1, 1]} : vector<189x24xf32> to vector<63x24xf32>
    %34 = tpu.concatenate %31, %32, %33 in 1 : vector<63x24xf32>, vector<63x24xf32>, vector<63x24xf32> -> vector<63x72xf32>
    %cst_37 = arith.constant dense<0.000000e+00> : vector<63x64xf32>
    %35 = tpu.matmul %34, %4, %cst_37 {dimension_numbers = #tpu.dot_dimension_numbers<[1], [0], [0], [1], [0, 0, 1, 1], [], []>} : vector<63x72xf32>, vector<72x64xf32>, vector<63x64xf32> -> vector<63x64xf32>
    %36 = vector.broadcast %5 : vector<1x64xf32> to vector<63x64xf32>
    %37 = arith.addf %35, %36 : vector<63x64xf32>
    %38 = vector.extract_strided_slice %37 {offsets = [0, 0], sizes = [63, 32], strides = [1, 1]} : vector<63x64xf32> to vector<63x32xf32>
    %cst_38 = arith.constant 0.000000e+00 : f32
    %39 = vector.broadcast %cst_38 : f32 to vector<63x32xf32>
    %40 = arith.maximumf %38, %39 : vector<63x32xf32>
    %41 = vector.extract_strided_slice %37 {offsets = [0, 32], sizes = [63, 32], strides = [1, 1]} : vector<63x64xf32> to vector<63x32xf32>
    %cst_39 = arith.constant 0.000000e+00 : f32
    %42 = vector.broadcast %cst_39 : f32 to vector<1x32xf32>
    %43 = tpu.concatenate %42, %40, %42 in 0 : vector<1x32xf32>, vector<63x32xf32>, vector<1x32xf32> -> vector<65x32xf32>
    %44 = vector.extract_strided_slice %43 {offsets = [0, 0], sizes = [63, 32], strides = [1, 1]} : vector<65x32xf32> to vector<63x32xf32>
    %45 = vector.extract_strided_slice %43 {offsets = [1, 0], sizes = [63, 32], strides = [1, 1]} : vector<65x32xf32> to vector<63x32xf32>
    %46 = vector.extract_strided_slice %43 {offsets = [2, 0], sizes = [63, 32], strides = [1, 1]} : vector<65x32xf32> to vector<63x32xf32>
    %47 = tpu.concatenate %44, %45, %46 in 1 : vector<63x32xf32>, vector<63x32xf32>, vector<63x32xf32> -> vector<63x96xf32>
    %cst_40 = arith.constant dense<0.000000e+00> : vector<63x32xf32>
    %48 = tpu.matmul %47, %6, %cst_40 {dimension_numbers = #tpu.dot_dimension_numbers<[1], [0], [0], [1], [0, 0, 1, 1], [], []>} : vector<63x96xf32>, vector<96x32xf32>, vector<63x32xf32> -> vector<63x32xf32>
    %49 = vector.broadcast %7 : vector<1x32xf32> to vector<63x32xf32>
    %50 = arith.addf %48, %49 : vector<63x32xf32>
    %51 = arith.addf %50, %41 : vector<63x32xf32>
    %cst_41 = arith.constant 0.000000e+00 : f32
    %52 = vector.broadcast %cst_41 : f32 to vector<63x32xf32>
    %53 = arith.maximumf %51, %52 : vector<63x32xf32>
    %cst_42 = arith.constant dense<0.000000e+00> : vector<96x32xf32>
    %54 = tpu.matmul %1, %53, %cst_42 {dimension_numbers = #tpu.dot_dimension_numbers<[1], [0], [0], [1], [0, 0, 1, 1], [], []>} : vector<96x63xf32>, vector<63x32xf32>, vector<96x32xf32> -> vector<96x32xf32>
    %55 = vector.extract_strided_slice %54 {offsets = [0, 0], sizes = [32, 32], strides = [1, 1]} : vector<96x32xf32> to vector<32x32xf32>
    %56 = vector.extract_strided_slice %54 {offsets = [32, 0], sizes = [32, 32], strides = [1, 1]} : vector<96x32xf32> to vector<32x32xf32>
    %57 = vector.extract_strided_slice %54 {offsets = [64, 0], sizes = [32, 32], strides = [1, 1]} : vector<96x32xf32> to vector<32x32xf32>
    %58 = tpu.concatenate %55, %56, %57 in 1 : vector<32x32xf32>, vector<32x32xf32>, vector<32x32xf32> -> vector<32x96xf32>
    %cst_43 = arith.constant dense<0.000000e+00> : vector<32x96xf32>
    %59 = tpu.matmul %58, %8, %cst_43 {dimension_numbers = #tpu.dot_dimension_numbers<[1], [0], [0], [1], [0, 0, 1, 1], [], []>} : vector<32x96xf32>, vector<96x96xf32>, vector<32x96xf32> -> vector<32x96xf32>
    %60 = vector.broadcast %9 : vector<1x96xf32> to vector<32x96xf32>
    %61 = arith.addf %59, %60 : vector<32x96xf32>
    %62 = vector.extract_strided_slice %61 {offsets = [0, 0], sizes = [32, 48], strides = [1, 1]} : vector<32x96xf32> to vector<32x48xf32>
    %cst_44 = arith.constant 0.000000e+00 : f32
    %63 = vector.broadcast %cst_44 : f32 to vector<32x48xf32>
    %64 = arith.maximumf %62, %63 : vector<32x48xf32>
    %65 = vector.extract_strided_slice %61 {offsets = [0, 48], sizes = [32, 48], strides = [1, 1]} : vector<32x96xf32> to vector<32x48xf32>
    %cst_45 = arith.constant 0.000000e+00 : f32
    %66 = vector.broadcast %cst_45 : f32 to vector<1x48xf32>
    %67 = tpu.concatenate %66, %64, %66 in 0 : vector<1x48xf32>, vector<32x48xf32>, vector<1x48xf32> -> vector<34x48xf32>
    %68 = vector.extract_strided_slice %67 {offsets = [0, 0], sizes = [32, 48], strides = [1, 1]} : vector<34x48xf32> to vector<32x48xf32>
    %69 = vector.extract_strided_slice %67 {offsets = [1, 0], sizes = [32, 48], strides = [1, 1]} : vector<34x48xf32> to vector<32x48xf32>
    %70 = vector.extract_strided_slice %67 {offsets = [2, 0], sizes = [32, 48], strides = [1, 1]} : vector<34x48xf32> to vector<32x48xf32>
    %71 = tpu.concatenate %68, %69, %70 in 1 : vector<32x48xf32>, vector<32x48xf32>, vector<32x48xf32> -> vector<32x144xf32>
    %cst_46 = arith.constant dense<0.000000e+00> : vector<32x48xf32>
    %72 = tpu.matmul %71, %10, %cst_46 {dimension_numbers = #tpu.dot_dimension_numbers<[1], [0], [0], [1], [0, 0, 1, 1], [], []>} : vector<32x144xf32>, vector<144x48xf32>, vector<32x48xf32> -> vector<32x48xf32>
    %73 = vector.broadcast %11 : vector<1x48xf32> to vector<32x48xf32>
    %74 = arith.addf %72, %73 : vector<32x48xf32>
    %75 = arith.addf %74, %65 : vector<32x48xf32>
    %cst_47 = arith.constant 0.000000e+00 : f32
    %76 = vector.broadcast %cst_47 : f32 to vector<32x48xf32>
    %77 = arith.maximumf %75, %76 : vector<32x48xf32>
    %cst_48 = arith.constant dense<0.000000e+00> : vector<48xf32>
    %78 = vector.multi_reduction <add>, %77, %cst_48 [0] : vector<32x48xf32> to vector<48xf32>
    %79 = vector.shape_cast %78 : vector<48xf32> to vector<1x48xf32>
    %cst_49 = arith.constant 3.200000e+01 : f32
    %80 = vector.broadcast %cst_49 : f32 to vector<1x48xf32>
    %81 = arith.divf %79, %80 : vector<1x48xf32>
    %cst_50 = arith.constant dense<0.000000e+00> : vector<1x64xf32>
    %82 = tpu.matmul %81, %12, %cst_50 {dimension_numbers = #tpu.dot_dimension_numbers<[1], [0], [0], [1], [0, 0, 1, 1], [], []>} : vector<1x48xf32>, vector<48x64xf32>, vector<1x64xf32> -> vector<1x64xf32>
    %83 = arith.addf %82, %13 : vector<1x64xf32>
    %cst_51 = arith.constant 0.000000e+00 : f32
    %84 = vector.broadcast %cst_51 : f32 to vector<1x64xf32>
    %85 = arith.maximumf %83, %84 : vector<1x64xf32>
    %cst_52 = arith.constant dense<0.000000e+00> : vector<1x32xf32>
    %86 = tpu.matmul %85, %14, %cst_52 {dimension_numbers = #tpu.dot_dimension_numbers<[1], [0], [0], [1], [0, 0, 1, 1], [], []>} : vector<1x64xf32>, vector<64x32xf32>, vector<1x32xf32> -> vector<1x32xf32>
    %87 = arith.addf %86, %15 : vector<1x32xf32>
    %88 = vector.extract_strided_slice %16 {offsets = [1, 0, 0], sizes = [1, 126, 40], strides = [1, 1, 1]} : vector<2x126x40xf32> to vector<1x126x40xf32>
    %89 = vector.shape_cast %88 : vector<1x126x40xf32> to vector<126x40xf32>
    %cst_53 = arith.constant 0.000000e+00 : f32
    %90 = vector.broadcast %cst_53 : f32 to vector<1x40xf32>
    %91 = tpu.concatenate %90, %89, %90 in 0 : vector<1x40xf32>, vector<126x40xf32>, vector<1x40xf32> -> vector<128x40xf32>
    %92 = vector.extract_strided_slice %91 {offsets = [0, 0], sizes = [126, 40], strides = [1, 1]} : vector<128x40xf32> to vector<126x40xf32>
    %93 = vector.extract_strided_slice %91 {offsets = [1, 0], sizes = [126, 40], strides = [1, 1]} : vector<128x40xf32> to vector<126x40xf32>
    %94 = vector.extract_strided_slice %91 {offsets = [2, 0], sizes = [126, 40], strides = [1, 1]} : vector<128x40xf32> to vector<126x40xf32>
    %95 = tpu.concatenate %92, %93, %94 in 1 : vector<126x40xf32>, vector<126x40xf32>, vector<126x40xf32> -> vector<126x120xf32>
    %cst_54 = arith.constant dense<0.000000e+00> : vector<126x24xf32>
    %96 = tpu.matmul %95, %2, %cst_54 {dimension_numbers = #tpu.dot_dimension_numbers<[1], [0], [0], [1], [0, 0, 1, 1], [], []>} : vector<126x120xf32>, vector<120x24xf32>, vector<126x24xf32> -> vector<126x24xf32>
    %97 = vector.broadcast %3 : vector<1x24xf32> to vector<126x24xf32>
    %98 = arith.addf %96, %97 : vector<126x24xf32>
    %cst_55 = arith.constant 0.000000e+00 : f32
    %99 = vector.broadcast %cst_55 : f32 to vector<126x24xf32>
    %100 = arith.maximumf %98, %99 : vector<126x24xf32>
    %cst_56 = arith.constant dense<0.000000e+00> : vector<189x24xf32>
    %101 = tpu.matmul %0, %100, %cst_56 {dimension_numbers = #tpu.dot_dimension_numbers<[1], [0], [0], [1], [0, 0, 1, 1], [], []>} : vector<189x126xf32>, vector<126x24xf32>, vector<189x24xf32> -> vector<189x24xf32>
    %102 = vector.extract_strided_slice %101 {offsets = [0, 0], sizes = [63, 24], strides = [1, 1]} : vector<189x24xf32> to vector<63x24xf32>
    %103 = vector.extract_strided_slice %101 {offsets = [63, 0], sizes = [63, 24], strides = [1, 1]} : vector<189x24xf32> to vector<63x24xf32>
    %104 = vector.extract_strided_slice %101 {offsets = [126, 0], sizes = [63, 24], strides = [1, 1]} : vector<189x24xf32> to vector<63x24xf32>
    %105 = tpu.concatenate %102, %103, %104 in 1 : vector<63x24xf32>, vector<63x24xf32>, vector<63x24xf32> -> vector<63x72xf32>
    %cst_57 = arith.constant dense<0.000000e+00> : vector<63x64xf32>
    %106 = tpu.matmul %105, %4, %cst_57 {dimension_numbers = #tpu.dot_dimension_numbers<[1], [0], [0], [1], [0, 0, 1, 1], [], []>} : vector<63x72xf32>, vector<72x64xf32>, vector<63x64xf32> -> vector<63x64xf32>
    %107 = vector.broadcast %5 : vector<1x64xf32> to vector<63x64xf32>
    %108 = arith.addf %106, %107 : vector<63x64xf32>
    %109 = vector.extract_strided_slice %108 {offsets = [0, 0], sizes = [63, 32], strides = [1, 1]} : vector<63x64xf32> to vector<63x32xf32>
    %cst_58 = arith.constant 0.000000e+00 : f32
    %110 = vector.broadcast %cst_58 : f32 to vector<63x32xf32>
    %111 = arith.maximumf %109, %110 : vector<63x32xf32>
    %112 = vector.extract_strided_slice %108 {offsets = [0, 32], sizes = [63, 32], strides = [1, 1]} : vector<63x64xf32> to vector<63x32xf32>
    %cst_59 = arith.constant 0.000000e+00 : f32
    %113 = vector.broadcast %cst_59 : f32 to vector<1x32xf32>
    %114 = tpu.concatenate %113, %111, %113 in 0 : vector<1x32xf32>, vector<63x32xf32>, vector<1x32xf32> -> vector<65x32xf32>
    %115 = vector.extract_strided_slice %114 {offsets = [0, 0], sizes = [63, 32], strides = [1, 1]} : vector<65x32xf32> to vector<63x32xf32>
    %116 = vector.extract_strided_slice %114 {offsets = [1, 0], sizes = [63, 32], strides = [1, 1]} : vector<65x32xf32> to vector<63x32xf32>
    %117 = vector.extract_strided_slice %114 {offsets = [2, 0], sizes = [63, 32], strides = [1, 1]} : vector<65x32xf32> to vector<63x32xf32>
    %118 = tpu.concatenate %115, %116, %117 in 1 : vector<63x32xf32>, vector<63x32xf32>, vector<63x32xf32> -> vector<63x96xf32>
    %cst_60 = arith.constant dense<0.000000e+00> : vector<63x32xf32>
    %119 = tpu.matmul %118, %6, %cst_60 {dimension_numbers = #tpu.dot_dimension_numbers<[1], [0], [0], [1], [0, 0, 1, 1], [], []>} : vector<63x96xf32>, vector<96x32xf32>, vector<63x32xf32> -> vector<63x32xf32>
    %120 = vector.broadcast %7 : vector<1x32xf32> to vector<63x32xf32>
    %121 = arith.addf %119, %120 : vector<63x32xf32>
    %122 = arith.addf %121, %112 : vector<63x32xf32>
    %cst_61 = arith.constant 0.000000e+00 : f32
    %123 = vector.broadcast %cst_61 : f32 to vector<63x32xf32>
    %124 = arith.maximumf %122, %123 : vector<63x32xf32>
    %cst_62 = arith.constant dense<0.000000e+00> : vector<96x32xf32>
    %125 = tpu.matmul %1, %124, %cst_62 {dimension_numbers = #tpu.dot_dimension_numbers<[1], [0], [0], [1], [0, 0, 1, 1], [], []>} : vector<96x63xf32>, vector<63x32xf32>, vector<96x32xf32> -> vector<96x32xf32>
    %126 = vector.extract_strided_slice %125 {offsets = [0, 0], sizes = [32, 32], strides = [1, 1]} : vector<96x32xf32> to vector<32x32xf32>
    %127 = vector.extract_strided_slice %125 {offsets = [32, 0], sizes = [32, 32], strides = [1, 1]} : vector<96x32xf32> to vector<32x32xf32>
    %128 = vector.extract_strided_slice %125 {offsets = [64, 0], sizes = [32, 32], strides = [1, 1]} : vector<96x32xf32> to vector<32x32xf32>
    %129 = tpu.concatenate %126, %127, %128 in 1 : vector<32x32xf32>, vector<32x32xf32>, vector<32x32xf32> -> vector<32x96xf32>
    %cst_63 = arith.constant dense<0.000000e+00> : vector<32x96xf32>
    %130 = tpu.matmul %129, %8, %cst_63 {dimension_numbers = #tpu.dot_dimension_numbers<[1], [0], [0], [1], [0, 0, 1, 1], [], []>} : vector<32x96xf32>, vector<96x96xf32>, vector<32x96xf32> -> vector<32x96xf32>
    %131 = vector.broadcast %9 : vector<1x96xf32> to vector<32x96xf32>
    %132 = arith.addf %130, %131 : vector<32x96xf32>
    %133 = vector.extract_strided_slice %132 {offsets = [0, 0], sizes = [32, 48], strides = [1, 1]} : vector<32x96xf32> to vector<32x48xf32>
    %cst_64 = arith.constant 0.000000e+00 : f32
    %134 = vector.broadcast %cst_64 : f32 to vector<32x48xf32>
    %135 = arith.maximumf %133, %134 : vector<32x48xf32>
    %136 = vector.extract_strided_slice %132 {offsets = [0, 48], sizes = [32, 48], strides = [1, 1]} : vector<32x96xf32> to vector<32x48xf32>
    %cst_65 = arith.constant 0.000000e+00 : f32
    %137 = vector.broadcast %cst_65 : f32 to vector<1x48xf32>
    %138 = tpu.concatenate %137, %135, %137 in 0 : vector<1x48xf32>, vector<32x48xf32>, vector<1x48xf32> -> vector<34x48xf32>
    %139 = vector.extract_strided_slice %138 {offsets = [0, 0], sizes = [32, 48], strides = [1, 1]} : vector<34x48xf32> to vector<32x48xf32>
    %140 = vector.extract_strided_slice %138 {offsets = [1, 0], sizes = [32, 48], strides = [1, 1]} : vector<34x48xf32> to vector<32x48xf32>
    %141 = vector.extract_strided_slice %138 {offsets = [2, 0], sizes = [32, 48], strides = [1, 1]} : vector<34x48xf32> to vector<32x48xf32>
    %142 = tpu.concatenate %139, %140, %141 in 1 : vector<32x48xf32>, vector<32x48xf32>, vector<32x48xf32> -> vector<32x144xf32>
    %cst_66 = arith.constant dense<0.000000e+00> : vector<32x48xf32>
    %143 = tpu.matmul %142, %10, %cst_66 {dimension_numbers = #tpu.dot_dimension_numbers<[1], [0], [0], [1], [0, 0, 1, 1], [], []>} : vector<32x144xf32>, vector<144x48xf32>, vector<32x48xf32> -> vector<32x48xf32>
    %144 = vector.broadcast %11 : vector<1x48xf32> to vector<32x48xf32>
    %145 = arith.addf %143, %144 : vector<32x48xf32>
    %146 = arith.addf %145, %136 : vector<32x48xf32>
    %cst_67 = arith.constant 0.000000e+00 : f32
    %147 = vector.broadcast %cst_67 : f32 to vector<32x48xf32>
    %148 = arith.maximumf %146, %147 : vector<32x48xf32>
    %cst_68 = arith.constant dense<0.000000e+00> : vector<48xf32>
    %149 = vector.multi_reduction <add>, %148, %cst_68 [0] : vector<32x48xf32> to vector<48xf32>
    %150 = vector.shape_cast %149 : vector<48xf32> to vector<1x48xf32>
    %cst_69 = arith.constant 3.200000e+01 : f32
    %151 = vector.broadcast %cst_69 : f32 to vector<1x48xf32>
    %152 = arith.divf %150, %151 : vector<1x48xf32>
    %cst_70 = arith.constant dense<0.000000e+00> : vector<1x64xf32>
    %153 = tpu.matmul %152, %12, %cst_70 {dimension_numbers = #tpu.dot_dimension_numbers<[1], [0], [0], [1], [0, 0, 1, 1], [], []>} : vector<1x48xf32>, vector<48x64xf32>, vector<1x64xf32> -> vector<1x64xf32>
    %154 = arith.addf %153, %13 : vector<1x64xf32>
    %cst_71 = arith.constant 0.000000e+00 : f32
    %155 = vector.broadcast %cst_71 : f32 to vector<1x64xf32>
    %156 = arith.maximumf %154, %155 : vector<1x64xf32>
    %cst_72 = arith.constant dense<0.000000e+00> : vector<1x32xf32>
    %157 = tpu.matmul %156, %14, %cst_72 {dimension_numbers = #tpu.dot_dimension_numbers<[1], [0], [0], [1], [0, 0, 1, 1], [], []>} : vector<1x64xf32>, vector<64x32xf32>, vector<1x32xf32> -> vector<1x32xf32>
    %158 = arith.addf %157, %15 : vector<1x32xf32>
    %159 = tpu.concatenate %87, %158 in 0 : vector<1x32xf32>, vector<1x32xf32> -> vector<2x32xf32>
    %c0_73 = arith.constant 0 : index
    %c0_74 = arith.constant 0 : index
    %160 = vector.load %arg18[%c0_73, %c0_74] : memref<2x32xf32, #tpu.memory_space<vmem>>, vector<2x32xf32>
    tpu.vector_store %arg18[%c0_73, %c0_74], %159 {strides = array<i32>} : memref<2x32xf32, #tpu.memory_space<vmem>>, vector<2x32xf32>,
    return
  }
  func.func @transform_0(%arg0: i32) -> (i32, i32, i32) {
    %c0_i32 = arith.constant 0 : i32
    %c0_i32_0 = arith.constant 0 : i32
    %c0_i32_1 = arith.constant 0 : i32
    return %arg0, %c0_i32, %c0_i32_0 : i32, i32, i32
  }
  func.func @transform_1(%arg0: i32) -> (i32, i32) {
    %c0_i32 = arith.constant 0 : i32
    %c0_i32_0 = arith.constant 0 : i32
    %c0_i32_1 = arith.constant 0 : i32
    return %c0_i32, %c0_i32_0 : i32, i32
  }
  func.func @transform_2(%arg0: i32) -> (i32, i32) {
    %c0_i32 = arith.constant 0 : i32
    %c0_i32_0 = arith.constant 0 : i32
    %c0_i32_1 = arith.constant 0 : i32
    return %c0_i32, %c0_i32_0 : i32, i32
  }
  func.func @transform_3(%arg0: i32) -> (i32, i32) {
    %c0_i32 = arith.constant 0 : i32
    %c0_i32_0 = arith.constant 0 : i32
    %c0_i32_1 = arith.constant 0 : i32
    return %c0_i32, %c0_i32_0 : i32, i32
  }
  func.func @transform_4(%arg0: i32) -> (i32, i32) {
    %c0_i32 = arith.constant 0 : i32
    %c0_i32_0 = arith.constant 0 : i32
    %c0_i32_1 = arith.constant 0 : i32
    return %c0_i32, %c0_i32_0 : i32, i32
  }
  func.func @transform_5(%arg0: i32) -> (i32, i32) {
    %c0_i32 = arith.constant 0 : i32
    %c0_i32_0 = arith.constant 0 : i32
    %c0_i32_1 = arith.constant 0 : i32
    return %c0_i32, %c0_i32_0 : i32, i32
  }
  func.func @transform_6(%arg0: i32) -> (i32, i32) {
    %c0_i32 = arith.constant 0 : i32
    %c0_i32_0 = arith.constant 0 : i32
    %c0_i32_1 = arith.constant 0 : i32
    return %c0_i32, %c0_i32_0 : i32, i32
  }
  func.func @transform_7(%arg0: i32) -> (i32, i32) {
    %c0_i32 = arith.constant 0 : i32
    %c0_i32_0 = arith.constant 0 : i32
    %c0_i32_1 = arith.constant 0 : i32
    return %c0_i32, %c0_i32_0 : i32, i32
  }
  func.func @transform_8(%arg0: i32) -> (i32, i32) {
    %c0_i32 = arith.constant 0 : i32
    %c0_i32_0 = arith.constant 0 : i32
    %c0_i32_1 = arith.constant 0 : i32
    return %c0_i32, %c0_i32_0 : i32, i32
  }
  func.func @transform_9(%arg0: i32) -> (i32, i32) {
    %c0_i32 = arith.constant 0 : i32
    %c0_i32_0 = arith.constant 0 : i32
    %c0_i32_1 = arith.constant 0 : i32
    return %c0_i32, %c0_i32_0 : i32, i32
  }
  func.func @transform_10(%arg0: i32) -> (i32, i32) {
    %c0_i32 = arith.constant 0 : i32
    %c0_i32_0 = arith.constant 0 : i32
    %c0_i32_1 = arith.constant 0 : i32
    return %c0_i32, %c0_i32_0 : i32, i32
  }
  func.func @transform_11(%arg0: i32) -> (i32, i32) {
    %c0_i32 = arith.constant 0 : i32
    %c0_i32_0 = arith.constant 0 : i32
    %c0_i32_1 = arith.constant 0 : i32
    return %c0_i32, %c0_i32_0 : i32, i32
  }
  func.func @transform_12(%arg0: i32) -> (i32, i32) {
    %c0_i32 = arith.constant 0 : i32
    %c0_i32_0 = arith.constant 0 : i32
    %c0_i32_1 = arith.constant 0 : i32
    return %c0_i32, %c0_i32_0 : i32, i32
  }
  func.func @transform_13(%arg0: i32) -> (i32, i32) {
    %c0_i32 = arith.constant 0 : i32
    %c0_i32_0 = arith.constant 0 : i32
    %c0_i32_1 = arith.constant 0 : i32
    return %c0_i32, %c0_i32_0 : i32, i32
  }
  func.func @transform_14(%arg0: i32) -> (i32, i32) {
    %c0_i32 = arith.constant 0 : i32
    %c0_i32_0 = arith.constant 0 : i32
    %c0_i32_1 = arith.constant 0 : i32
    return %c0_i32, %c0_i32_0 : i32, i32
  }
  func.func @transform_15(%arg0: i32) -> (i32, i32) {
    %c0_i32 = arith.constant 0 : i32
    %c0_i32_0 = arith.constant 0 : i32
    %c0_i32_1 = arith.constant 0 : i32
    return %c0_i32, %c0_i32_0 : i32, i32
  }
  func.func @transform_16(%arg0: i32) -> (i32, i32) {
    %c0_i32 = arith.constant 0 : i32
    %c0_i32_0 = arith.constant 0 : i32
    %c0_i32_1 = arith.constant 0 : i32
    return %c0_i32, %c0_i32_0 : i32, i32
  }
  func.func @transform_17(%arg0: i32) -> (i32, i32) {
    %c0_i32 = arith.constant 0 : i32
    %c0_i32_0 = arith.constant 0 : i32
    return %arg0, %c0_i32 : i32, i32
  }
}

</mosaic_0001>

<llo_original>
// kernel: cnn_forward.1
$region0: #{cnn_forward.1}
  #allocation0 [shape = 'u32[]', space=smem, size = 0x4, offset = 0x4, fixed_abs, tag = 'smem constant byte address 0x4 - core index']
  #allocation1 [shape = 'u32[72,128]{1,0:T(1,128)}', space=vmem, size = 0x9000, scoped, tag = 'internal scratch']
  %s0 = inlined_call_operand.vmem [shape: f32[2,126,40], index: 0, kind: input, shape index: {}]
  %s1 = inlined_call_operand.vmem [shape: f32[189,126], index: 1, kind: input, shape index: {}]
  %s2 = inlined_call_operand.vmem [shape: f32[96,63], index: 2, kind: input, shape index: {}]
  %s3 = inlined_call_operand.vmem [shape: f32[120,24], index: 3, kind: input, shape index: {}]
  %s4 = inlined_call_operand.vmem [shape: f32[1,24], index: 4, kind: input, shape index: {}]
  %s5 = inlined_call_operand.vmem [shape: f32[72,64], index: 5, kind: input, shape index: {}]
  %s6 = inlined_call_operand.vmem [shape: f32[1,64], index: 6, kind: input, shape index: {}]
  %s7 = inlined_call_operand.vmem [shape: f32[96,32], index: 7, kind: input, shape index: {}]
  %s8 = inlined_call_operand.vmem [shape: f32[1,32], index: 8, kind: input, shape index: {}]
  %s9 = inlined_call_operand.vmem [shape: f32[96,96], index: 9, kind: input, shape index: {}]
  %s10 = inlined_call_operand.vmem [shape: f32[1,96], index: 10, kind: input, shape index: {}]
  %s11 = inlined_call_operand.vmem [shape: f32[144,48], index: 11, kind: input, shape index: {}]
  %s12 = inlined_call_operand.vmem [shape: f32[1,48], index: 12, kind: input, shape index: {}]
  %s13 = inlined_call_operand.vmem [shape: f32[48,64], index: 13, kind: input, shape index: {}]
  %s14 = inlined_call_operand.vmem [shape: f32[1,64], index: 14, kind: input, shape index: {}]
  %s15 = inlined_call_operand.vmem [shape: f32[64,32], index: 15, kind: input, shape index: {}]
  %s16 = inlined_call_operand.vmem [shape: f32[1,32], index: 16, kind: input, shape index: {}]
  %s17 = inlined_call_operand.hbm [shape: f32[2,32], index: 17, kind: output, shape index: {}]
  %s18 = sld [smem:[#allocation0]]
  $region78: #{cnn_forward.1} parent=0
    _
  %s20 = ssub.s32 1, %s18
  %s21 = scalar_select 0, %s20, %s18
  $region1: #{cnn_forward.1} parent=0
    #allocation2 [shape = 'u8[1024]{0}', space=vmem, size = 0x400, scoped, tag = 'output window, operand 0, single buffered']
    #allocation3 [shape = 's32[1]{0}', space=sflag, size = 0x4, scoped, tag = 'scoped memory for cnn_forward.1']
    %22 = vsyncpa [#allocation3], 0
    // Predicated region
    $region2: #{cnn_forward.1} parent=1 // pred_check
      _
    $region3: #{cnn_forward.1} parent=1 // pred_check_branch
      %24 = sbr.rel (0) target = $region5
    $region4: #{cnn_forward.1} parent=1 // pred_region
      _
    $region5: #{cnn_forward.1} parent=1 // pred_fallthru
      _
    // Predicated region
    $region6: #{cnn_forward.1} parent=1 // pred_check
      _
    $region7: #{cnn_forward.1} parent=1 // pred_check_branch
      %26 = sbr.rel (0) target = $region9
    $region8: #{cnn_forward.1} parent=1 // pred_region
      _
    $region9: #{cnn_forward.1} parent=1 // pred_fallthru
      _
    // Predicated region
    $region10: #{cnn_forward.1} parent=1 // pred_check
      _
    $region11: #{cnn_forward.1} parent=1 // pred_check_branch
      %28 = sbr.rel (0) target = $region13
    $region12: #{cnn_forward.1} parent=1 // pred_region
      _
    $region13: #{cnn_forward.1} parent=1 // pred_fallthru
      _
    // Predicated region
    $region14: #{cnn_forward.1} parent=1 // pred_check
      _
    $region15: #{cnn_forward.1} parent=1 // pred_check_branch
      %30 = sbr.rel (0) target = $region17
    $region16: #{cnn_forward.1} parent=1 // pred_region
      _
    $region17: #{cnn_forward.1} parent=1 // pred_fallthru
      _
    // Predicated region
    $region18: #{cnn_forward.1} parent=1 // pred_check
      _
    $region19: #{cnn_forward.1} parent=1 // pred_check_branch
      %32 = sbr.rel (0) target = $region21
    $region20: #{cnn_forward.1} parent=1 // pred_region
      _
    $region21: #{cnn_forward.1} parent=1 // pred_fallthru
      _
    // Predicated region
    $region22: #{cnn_forward.1} parent=1 // pred_check
      _
    $region23: #{cnn_forward.1} parent=1 // pred_check_branch
      %34 = sbr.rel (0) target = $region25
    $region24: #{cnn_forward.1} parent=1 // pred_region
      _
    $region25: #{cnn_forward.1} parent=1 // pred_fallthru
      _
    // Predicated region
    $region26: #{cnn_forward.1} parent=1 // pred_check
      _
    $region27: #{cnn_forward.1} parent=1 // pred_check_branch
      %36 = sbr.rel (0) target = $region29
    $region28: #{cnn_forward.1} parent=1 // pred_region
      _
    $region29: #{cnn_forward.1} parent=1 // pred_fallthru
      _
    // Predicated region
    $region30: #{cnn_forward.1} parent=1 // pred_check
      _
    $region31: #{cnn_forward.1} parent=1 // pred_check_branch
      %38 = sbr.rel (0) target = $region33
    $region32: #{cnn_forward.1} parent=1 // pred_region
      _
    $region33: #{cnn_forward.1} parent=1 // pred_fallthru
      _
    // Predicated region
    $region34: #{cnn_forward.1} parent=1 // pred_check
      _
    $region35: #{cnn_forward.1} parent=1 // pred_check_branch
      %40 = sbr.rel (0) target = $region37
    $region36: #{cnn_forward.1} parent=1 // pred_region
      _
    $region37: #{cnn_forward.1} parent=1 // pred_fallthru
      _
    // Predicated region
    $region38: #{cnn_forward.1} parent=1 // pred_check
      _
    $region39: #{cnn_forward.1} parent=1 // pred_check_branch
      %42 = sbr.rel (0) target = $region41
    $region40: #{cnn_forward.1} parent=1 // pred_region
      _
    $region41: #{cnn_forward.1} parent=1 // pred_fallthru
      _
    // Predicated region
    $region42: #{cnn_forward.1} parent=1 // pred_check
      _
    $region43: #{cnn_forward.1} parent=1 // pred_check_branch
      %44 = sbr.rel (0) target = $region45
    $region44: #{cnn_forward.1} parent=1 // pred_region
      _
    $region45: #{cnn_forward.1} parent=1 // pred_fallthru
      _
    // Predicated region
    $region46: #{cnn_forward.1} parent=1 // pred_check
      _
    $region47: #{cnn_forward.1} parent=1 // pred_check_branch
      %46 = sbr.rel (0) target = $region49
    $region48: #{cnn_forward.1} parent=1 // pred_region
      _
    $region49: #{cnn_forward.1} parent=1 // pred_fallthru
      _
    // Predicated region
    $region50: #{cnn_forward.1} parent=1 // pred_check
      _
    $region51: #{cnn_forward.1} parent=1 // pred_check_branch
      %48 = sbr.rel (0) target = $region53
    $region52: #{cnn_forward.1} parent=1 // pred_region
      _
    $region53: #{cnn_forward.1} parent=1 // pred_fallthru
      _
    // Predicated region
    $region54: #{cnn_forward.1} parent=1 // pred_check
      _
    $region55: #{cnn_forward.1} parent=1 // pred_check_branch
      %50 = sbr.rel (0) target = $region57
    $region56: #{cnn_forward.1} parent=1 // pred_region
      _
    $region57: #{cnn_forward.1} parent=1 // pred_fallthru
      _
    // Predicated region
    $region58: #{cnn_forward.1} parent=1 // pred_check
      _
    $region59: #{cnn_forward.1} parent=1 // pred_check_branch
      %52 = sbr.rel (0) target = $region61
    $region60: #{cnn_forward.1} parent=1 // pred_region
      _
    $region61: #{cnn_forward.1} parent=1 // pred_fallthru
      _
    // Predicated region
    $region62: #{cnn_forward.1} parent=1 // pred_check
      _
    $region63: #{cnn_forward.1} parent=1 // pred_check_branch
      %54 = sbr.rel (0) target = $region65
    $region64: #{cnn_forward.1} parent=1 // pred_region
      _
    $region65: #{cnn_forward.1} parent=1 // pred_fallthru
      _
    // Predicated region
    $region66: #{cnn_forward.1} parent=1 // pred_check
      _
    $region67: #{cnn_forward.1} parent=1 // pred_check_branch
      %56 = sbr.rel (0) target = $region69
    $region68: #{cnn_forward.1} parent=1 // pred_region
      _
    $region69: #{cnn_forward.1} parent=1 // pred_fallthru
      _
    %v57 = vld [vmem:[%s1] sm:$0xff]
    %v58 = vld [vmem:[%s1 + $0x8] sm:$0xff]
    %v59 = vld [vmem:[%s1 + $0x10] sm:$0xff]
    %v60 = vld [vmem:[%s1 + $0x18] sm:$0xff]
    %v61 = vld [vmem:[%s1 + $0x20] sm:$0xff]
    %v62 = vld [vmem:[%s1 + $0x28] sm:$0xff]
    %v63 = vld [vmem:[%s1 + $0x30] sm:$0xff]
    %v64 = vld [vmem:[%s1 + $0x38] sm:$0xff]
    %v65 = vld [vmem:[%s1 + $0x40] sm:$0xff]
    %v66 = vld [vmem:[%s1 + $0x48] sm:$0xff]
    %v67 = vld [vmem:[%s1 + $0x50] sm:$0xff]
    %v68 = vld [vmem:[%s1 + $0x58] sm:$0xff]
    %v69 = vld [vmem:[%s1 + $0x60] sm:$0xff]
    %v70 = vld [vmem:[%s1 + $0x68] sm:$0xff]
    %v71 = vld [vmem:[%s1 + $0x70] sm:$0xff]
    %v72 = vld [vmem:[%s1 + $0x78] sm:$0xff]
    %v73 = vld [vmem:[%s1 + $0x80] sm:$0xff]
    %v74 = vld [vmem:[%s1 + $0x88] sm:$0xff]
    %v75 = vld [vmem:[%s1 + $0x90] sm:$0xff]
    %v76 = vld [vmem:[%s1 + $0x98] sm:$0xff]
    %v77 = vld [vmem:[%s1 + $0xa0] sm:$0xff]
    %v78 = vld [vmem:[%s1 + $0xa8] sm:$0xff]
    %v79 = vld [vmem:[%s1 + $0xb0] sm:$0xff]
    %v80 = vld [vmem:[%s1 + $0xb8] sm:$0x1f]
    %v81 = vld [vmem:[%s2] sm:$0xff]
    %v82 = vld [vmem:[%s2 + $0x8] sm:$0xff]
    %v83 = vld [vmem:[%s2 + $0x10] sm:$0xff]
    %v84 = vld [vmem:[%s2 + $0x18] sm:$0xff]
    %v85 = vld [vmem:[%s2 + $0x20] sm:$0xff]
    %v86 = vld [vmem:[%s2 + $0x28] sm:$0xff]
    %v87 = vld [vmem:[%s2 + $0x30] sm:$0xff]
    %v88 = vld [vmem:[%s2 + $0x38] sm:$0xff]
    %v89 = vld [vmem:[%s2 + $0x40] sm:$0xff]
    %v90 = vld [vmem:[%s2 + $0x48] sm:$0xff]
    %v91 = vld [vmem:[%s2 + $0x50] sm:$0xff]
    %v92 = vld [vmem:[%s2 + $0x58] sm:$0xff]
    %v93 = vld [vmem:[%s3] sm:$0xff]
    %v94 = vld [vmem:[%s3 + $0x8] sm:$0xff]
    %v95 = vld [vmem:[%s3 + $0x10] sm:$0xff]
    %v96 = vld [vmem:[%s3 + $0x18] sm:$0xff]
    %v97 = vld [vmem:[%s3 + $0x20] sm:$0xff]
    %v98 = vld [vmem:[%s3 + $0x28] sm:$0xff]
    %v99 = vld [vmem:[%s3 + $0x30] sm:$0xff]
    %v100 = vld [vmem:[%s3 + $0x38] sm:$0xff]
    %v101 = vld [vmem:[%s3 + $0x40] sm:$0xff]
    %v102 = vld [vmem:[%s3 + $0x48] sm:$0xff]
    %v103 = vld [vmem:[%s3 + $0x50] sm:$0xff]
    %v104 = vld [vmem:[%s3 + $0x58] sm:$0xff]
    %v105 = vld [vmem:[%s3 + $0x60] sm:$0xff]
    %v106 = vld [vmem:[%s3 + $0x68] sm:$0xff]
    %v107 = vld [vmem:[%s3 + $0x70] sm:$0xff]
    %v108 = vld [vmem:[%s4] sm:$0x1]
    %v109 = vld [vmem:[%s5] sm:$0xff]
    %v110 = vld [vmem:[%s5 + $0x8] sm:$0xff]
    %v111 = vld [vmem:[%s5 + $0x10] sm:$0xff]
    %v112 = vld [vmem:[%s5 + $0x18] sm:$0xff]
    %v113 = vld [vmem:[%s5 + $0x20] sm:$0xff]
    %v114 = vld [vmem:[%s5 + $0x28] sm:$0xff]
    %v115 = vld [vmem:[%s5 + $0x30] sm:$0xff]
    %v116 = vld [vmem:[%s5 + $0x38] sm:$0xff]
    %v117 = vld [vmem:[%s5 + $0x40] sm:$0xff]
    %v118 = vld [vmem:[%s6] sm:$0x1]
    %v119 = vld [vmem:[%s7] sm:$0xff]
    %v120 = vld [vmem:[%s7 + $0x8] sm:$0xff]
    %v121 = vld [vmem:[%s7 + $0x10] sm:$0xff]
    %v122 = vld [vmem:[%s7 + $0x18] sm:$0xff]
    %v123 = vld [vmem:[%s7 + $0x20] sm:$0xff]
    %v124 = vld [vmem:[%s7 + $0x28] sm:$0xff]
    %v125 = vld [vmem:[%s7 + $0x30] sm:$0xff]
    %v126 = vld [vmem:[%s7 + $0x38] sm:$0xff]
    %v127 = vld [vmem:[%s7 + $0x40] sm:$0xff]
    %v128 = vld [vmem:[%s7 + $0x48] sm:$0xff]
    %v129 = vld [vmem:[%s7 + $0x50] sm:$0xff]
    %v130 = vld [vmem:[%s7 + $0x58] sm:$0xff]
    %v131 = vld [vmem:[%s8] sm:$0x1]
    %v132 = vld [vmem:[%s9] sm:$0xff]
    %v133 = vld [vmem:[%s9 + $0x8] sm:$0xff]
    %v134 = vld [vmem:[%s9 + $0x10] sm:$0xff]
    %v135 = vld [vmem:[%s9 + $0x18] sm:$0xff]
    %v136 = vld [vmem:[%s9 + $0x20] sm:$0xff]
    %v137 = vld [vmem:[%s9 + $0x28] sm:$0xff]
    %v138 = vld [vmem:[%s9 + $0x30] sm:$0xff]
    %v139 = vld [vmem:[%s9 + $0x38] sm:$0xff]
    %v140 = vld [vmem:[%s9 + $0x40] sm:$0xff]
    %v141 = vld [vmem:[%s9 + $0x48] sm:$0xff]
    %v142 = vld [vmem:[%s9 + $0x50] sm:$0xff]
    %v143 = vld [vmem:[%s9 + $0x58] sm:$0xff]
    %v144 = vld [vmem:[%s10] sm:$0x1]
    %v145 = vld [vmem:[%s11] sm:$0xff]
    %v146 = vld [vmem:[%s11 + $0x8] sm:$0xff]
    %v147 = vld [vmem:[%s11 + $0x10] sm:$0xff]
    %v148 = vld [vmem:[%s11 + $0x18] sm:$0xff]
    %v149 = vld [vmem:[%s11 + $0x20] sm:$0xff]
    %v150 = vld [vmem:[%s11 + $0x28] sm:$0xff]
    %v151 = vld [vmem:[%s11 + $0x30] sm:$0xff]
    %v152 = vld [vmem:[%s11 + $0x38] sm:$0xff]
    %v153 = vld [vmem:[%s11 + $0x40] sm:$0xff]
    %v154 = vld [vmem:[%s11 + $0x48] sm:$0xff]
    %v155 = vld [vmem:[%s11 + $0x50] sm:$0xff]
    %v156 = vld [vmem:[%s11 + $0x58] sm:$0xff]
    %v157 = vld [vmem:[%s11 + $0x60] sm:$0xff]
    %v158 = vld [vmem:[%s11 + $0x68] sm:$0xff]
    %v159 = vld [vmem:[%s11 + $0x70] sm:$0xff]
    %v160 = vld [vmem:[%s11 + $0x78] sm:$0xff]
    %v161 = vld [vmem:[%s11 + $0x80] sm:$0xff]
    %v162 = vld [vmem:[%s11 + $0x88] sm:$0xff]
    %v163 = vld [vmem:[%s12] sm:$0x1]
    %v164 = vld [vmem:[%s13] sm:$0xff]
    %v165 = vld [vmem:[%s13 + $0x8] sm:$0xff]
    %v166 = vld [vmem:[%s13 + $0x10] sm:$0xff]
    %v167 = vld [vmem:[%s13 + $0x18] sm:$0xff]
    %v168 = vld [vmem:[%s13 + $0x20] sm:$0xff]
    %v169 = vld [vmem:[%s13 + $0x28] sm:$0xff]
    %v170 = vld [vmem:[%s14] sm:$0x1]
    %v171 = vld [vmem:[%s15] sm:$0xff]
    %v172 = vld [vmem:[%s15 + $0x8] sm:$0xff]
    %v173 = vld [vmem:[%s15 + $0x10] sm:$0xff]
    %v174 = vld [vmem:[%s15 + $0x18] sm:$0xff]
    %v175 = vld [vmem:[%s15 + $0x20] sm:$0xff]
    %v176 = vld [vmem:[%s15 + $0x28] sm:$0xff]
    %v177 = vld [vmem:[%s15 + $0x30] sm:$0xff]
    %v178 = vld [vmem:[%s15 + $0x38] sm:$0xff]
    %v179 = vld [vmem:[%s16] sm:$0x1]
    %v180 = vld [vmem:[%s0] sm:$0xff]
    %v181 = vld [vmem:[%s0 + $0x8] sm:$0xff]
    %v182 = vld [vmem:[%s0 + $0x10] sm:$0xff]
    %v183 = vld [vmem:[%s0 + $0x18] sm:$0xff]
    %v184 = vld [vmem:[%s0 + $0x20] sm:$0xff]
    %v185 = vld [vmem:[%s0 + $0x28] sm:$0xff]
    %v186 = vld [vmem:[%s0 + $0x30] sm:$0xff]
    %v187 = vld [vmem:[%s0 + $0x38] sm:$0xff]
    %v188 = vld [vmem:[%s0 + $0x40] sm:$0xff]
    %v189 = vld [vmem:[%s0 + $0x48] sm:$0xff]
    %v190 = vld [vmem:[%s0 + $0x50] sm:$0xff]
    %v191 = vld [vmem:[%s0 + $0x58] sm:$0xff]
    %v192 = vld [vmem:[%s0 + $0x60] sm:$0xff]
    %v193 = vld [vmem:[%s0 + $0x68] sm:$0xff]
    %v194 = vld [vmem:[%s0 + $0x70] sm:$0xff]
    %v195 = vld [vmem:[%s0 + $0x78] sm:$0x3f]
    %v196 = vld [vmem:[%s0 + $0x80] sm:$0xff]
    %v197 = vld [vmem:[%s0 + $0x88] sm:$0xff]
    %v198 = vld [vmem:[%s0 + $0x90] sm:$0xff]
    %v199 = vld [vmem:[%s0 + $0x98] sm:$0xff]
    %v200 = vld [vmem:[%s0 + $0xa0] sm:$0xff]
    %v201 = vld [vmem:[%s0 + $0xa8] sm:$0xff]
    %v202 = vld [vmem:[%s0 + $0xb0] sm:$0xff]
    %v203 = vld [vmem:[%s0 + $0xb8] sm:$0xff]
    %v204 = vld [vmem:[%s0 + $0xc0] sm:$0xff]
    %v205 = vld [vmem:[%s0 + $0xc8] sm:$0xff]
    %v206 = vld [vmem:[%s0 + $0xd0] sm:$0xff]
    %v207 = vld [vmem:[%s0 + $0xd8] sm:$0xff]
    %v208 = vld [vmem:[%s0 + $0xe0] sm:$0xff]
    %v209 = vld [vmem:[%s0 + $0xe8] sm:$0xff]
    %v210 = vld [vmem:[%s0 + $0xf0] sm:$0xff]
    %v211 = vld [vmem:[%s0 + $0xf8] sm:$0x3f]
    %vm228 = vcmask 1040384
    %v229 = vrot.slane %v180, 7
    %v230 = vrot.slane %v181, 7
    %v231 = vsel %vm228, %v229, %v230
    %v232 = vrot.slane %v182, 7
    %v233 = vsel %vm228, %v230, %v232
    %v234 = vrot.slane %v183, 7
    %v235 = vsel %vm228, %v232, %v234
    %v236 = vrot.slane %v184, 7
    %v237 = vsel %vm228, %v234, %v236
    %v238 = vrot.slane %v185, 7
    %v239 = vsel %vm228, %v236, %v238
    %v240 = vrot.slane %v186, 7
    %v241 = vsel %vm228, %v238, %v240
    %v242 = vrot.slane %v187, 7
    %v243 = vsel %vm228, %v240, %v242
    %v244 = vrot.slane %v188, 7
    %v245 = vsel %vm228, %v242, %v244
    %v246 = vrot.slane %v189, 7
    %v247 = vsel %vm228, %v244, %v246
    %v248 = vrot.slane %v190, 7
    %v249 = vsel %vm228, %v246, %v248
    %v250 = vrot.slane %v191, 7
    %v251 = vsel %vm228, %v248, %v250
    %v252 = vrot.slane %v192, 7
    %v253 = vsel %vm228, %v250, %v252
    %v254 = vrot.slane %v193, 7
    %v255 = vsel %vm228, %v252, %v254
    %v256 = vrot.slane %v194, 7
    %v257 = vsel %vm228, %v254, %v256
    %v258 = vrot.slane %v195, 7
    %v259 = vsel %vm228, %v256, %v258
    %v276 = vsel %vm228, 0.0, %v229
    %vm277 = vcmask 1046528
    %v278 = vsel %vm277, %v259, 0.0
    %v281 = vrot.slane %v276, 1
    %v282 = vrot.slane %v231, 1
    %v283 = vsel %vm277, %v281, %v282
    %v284 = vrot.slane %v233, 1
    %v285 = vsel %vm277, %v282, %v284
    %v286 = vrot.slane %v235, 1
    %v287 = vsel %vm277, %v284, %v286
    %v288 = vrot.slane %v237, 1
    %v289 = vsel %vm277, %v286, %v288
    %v290 = vrot.slane %v239, 1
    %v291 = vsel %vm277, %v288, %v290
    %v292 = vrot.slane %v241, 1
    %v293 = vsel %vm277, %v290, %v292
    %v294 = vrot.slane %v243, 1
    %v295 = vsel %vm277, %v292, %v294
    %v296 = vrot.slane %v245, 1
    %v297 = vsel %vm277, %v294, %v296
    %v298 = vrot.slane %v247, 1
    %v299 = vsel %vm277, %v296, %v298
    %v300 = vrot.slane %v249, 1
    %v301 = vsel %vm277, %v298, %v300
    %v302 = vrot.slane %v251, 1
    %v303 = vsel %vm277, %v300, %v302
    %v304 = vrot.slane %v253, 1
    %v305 = vsel %vm277, %v302, %v304
    %v306 = vrot.slane %v255, 1
    %v307 = vsel %vm277, %v304, %v306
    %v308 = vrot.slane %v257, 1
    %v309 = vsel %vm277, %v306, %v308
    %v310 = vrot.slane %v278, 1
    %v311 = vsel %vm277, %v308, %v310
    %312 = vrot.lane.b32.xlu0 %v283, 40
    %v313 = vpop.permute.xlu0 %312
    %314 = vrot.lane.b32.xlu0 %v285, 40
    %v315 = vpop.permute.xlu0 %314
    %316 = vrot.lane.b32.xlu0 %v287, 40
    %v317 = vpop.permute.xlu0 %316
    %318 = vrot.lane.b32.xlu0 %v289, 40
    %v319 = vpop.permute.xlu0 %318
    %320 = vrot.lane.b32.xlu0 %v291, 40
    %v321 = vpop.permute.xlu0 %320
    %322 = vrot.lane.b32.xlu0 %v293, 40
    %v323 = vpop.permute.xlu0 %322
    %324 = vrot.lane.b32.xlu0 %v295, 40
    %v325 = vpop.permute.xlu0 %324
    %326 = vrot.lane.b32.xlu0 %v297, 40
    %v327 = vpop.permute.xlu0 %326
    %328 = vrot.lane.b32.xlu0 %v299, 40
    %v329 = vpop.permute.xlu0 %328
    %330 = vrot.lane.b32.xlu0 %v301, 40
    %v331 = vpop.permute.xlu0 %330
    %332 = vrot.lane.b32.xlu0 %v303, 40
    %v333 = vpop.permute.xlu0 %332
    %334 = vrot.lane.b32.xlu0 %v305, 40
    %v335 = vpop.permute.xlu0 %334
    %336 = vrot.lane.b32.xlu0 %v307, 40
    %v337 = vpop.permute.xlu0 %336
    %338 = vrot.lane.b32.xlu0 %v309, 40
    %v339 = vpop.permute.xlu0 %338
    %340 = vrot.lane.b32.xlu0 %v311, 40
    %v341 = vpop.permute.xlu0 %340
    %342 = vrot.lane.b32.xlu0 %v310, 40
    %v343 = vpop.permute.xlu0 %342
    %vm360 = vcmask 1045504
    %v361 = vrot.slane %v276, 2
    %v362 = vrot.slane %v231, 2
    %v363 = vsel %vm360, %v361, %v362
    %v364 = vrot.slane %v233, 2
    %v365 = vsel %vm360, %v362, %v364
    %v366 = vrot.slane %v235, 2
    %v367 = vsel %vm360, %v364, %v366
    %v368 = vrot.slane %v237, 2
    %v369 = vsel %vm360, %v366, %v368
    %v370 = vrot.slane %v239, 2
    %v371 = vsel %vm360, %v368, %v370
    %v372 = vrot.slane %v241, 2
    %v373 = vsel %vm360, %v370, %v372
    %v374 = vrot.slane %v243, 2
    %v375 = vsel %vm360, %v372, %v374
    %v376 = vrot.slane %v245, 2
    %v377 = vsel %vm360, %v374, %v376
    %v378 = vrot.slane %v247, 2
    %v379 = vsel %vm360, %v376, %v378
    %v380 = vrot.slane %v249, 2
    %v381 = vsel %vm360, %v378, %v380
    %v382 = vrot.slane %v251, 2
    %v383 = vsel %vm360, %v380, %v382
    %v384 = vrot.slane %v253, 2
    %v385 = vsel %vm360, %v382, %v384
    %v386 = vrot.slane %v255, 2
    %v387 = vsel %vm360, %v384, %v386
    %v388 = vrot.slane %v257, 2
    %v389 = vsel %vm360, %v386, %v388
    %v390 = vrot.slane %v278, 2
    %v391 = vsel %vm360, %v388, %v390
    %392 = vrot.lane.b32.xlu0 %v363, 80
    %v393 = vpop.permute.xlu0 %392
    %394 = vrot.lane.b32.xlu0 %v365, 80
    %v395 = vpop.permute.xlu0 %394
    %396 = vrot.lane.b32.xlu0 %v367, 80
    %v397 = vpop.permute.xlu0 %396
    %398 = vrot.lane.b32.xlu0 %v369, 80
    %v399 = vpop.permute.xlu0 %398
    %400 = vrot.lane.b32.xlu0 %v371, 80
    %v401 = vpop.permute.xlu0 %400
    %402 = vrot.lane.b32.xlu0 %v373, 80
    %v403 = vpop.permute.xlu0 %402
    %404 = vrot.lane.b32.xlu0 %v375, 80
    %v405 = vpop.permute.xlu0 %404
    %406 = vrot.lane.b32.xlu0 %v377, 80
    %v407 = vpop.permute.xlu0 %406
    %408 = vrot.lane.b32.xlu0 %v379, 80
    %v409 = vpop.permute.xlu0 %408
    %410 = vrot.lane.b32.xlu0 %v381, 80
    %v411 = vpop.permute.xlu0 %410
    %412 = vrot.lane.b32.xlu0 %v383, 80
    %v413 = vpop.permute.xlu0 %412
    %414 = vrot.lane.b32.xlu0 %v385, 80
    %v415 = vpop.permute.xlu0 %414
    %416 = vrot.lane.b32.xlu0 %v387, 80
    %v417 = vpop.permute.xlu0 %416
    %418 = vrot.lane.b32.xlu0 %v389, 80
    %v419 = vpop.permute.xlu0 %418
    %420 = vrot.lane.b32.xlu0 %v391, 80
    %v421 = vpop.permute.xlu0 %420
    %422 = vrot.lane.b32.xlu0 %v390, 80
    %v423 = vpop.permute.xlu0 %422
    %vm440 = vcmask 326656
    %v441 = vsel %vm440, %v276, %v313
    %v442 = vsel %vm440, %v231, %v315
    %v443 = vsel %vm440, %v233, %v317
    %v444 = vsel %vm440, %v235, %v319
    %v445 = vsel %vm440, %v237, %v321
    %v446 = vsel %vm440, %v239, %v323
    %v447 = vsel %vm440, %v241, %v325
    %v448 = vsel %vm440, %v243, %v327
    %v449 = vsel %vm440, %v245, %v329
    %v450 = vsel %vm440, %v247, %v331
    %v451 = vsel %vm440, %v249, %v333
    %v452 = vsel %vm440, %v251, %v335
    %v453 = vsel %vm440, %v253, %v337
    %v454 = vsel %vm440, %v255, %v339
    %v455 = vsel %vm440, %v257, %v341
    %v456 = vsel %vm440, %v278, %v343
    %vm457 = vcmask 654336
    %v458 = vsel %vm457, %v441, %v393
    %v459 = vsel %vm457, %v442, %v395
    %v460 = vsel %vm457, %v443, %v397
    %v461 = vsel %vm457, %v444, %v399
    %v462 = vsel %vm457, %v445, %v401
    %v463 = vsel %vm457, %v446, %v403
    %v464 = vsel %vm457, %v447, %v405
    %v465 = vsel %vm457, %v448, %v407
    %v466 = vsel %vm457, %v449, %v409
    %v467 = vsel %vm457, %v450, %v411
    %v468 = vsel %vm457, %v451, %v413
    %v469 = vsel %vm457, %v452, %v415
    %v470 = vsel %vm457, %v453, %v417
    %v471 = vsel %vm457, %v454, %v419
    %v472 = vsel %vm457, %v455, %v421
    %v473 = vsel %vm457, %v456, %v423
    %v475 = vperm.slane %v108, 0
    %vm477 = vcmask 982016
    %v479 = vsel %vm477, %v458, 0
    %v482 = vsel %vm477, %v459, 0
    %v485 = vsel %vm477, %v460, 0
    %v488 = vsel %vm477, %v461, 0
    %v491 = vsel %vm477, %v462, 0
    %v494 = vsel %vm477, %v463, 0
    %v497 = vsel %vm477, %v464, 0
    %v500 = vsel %vm477, %v465, 0
    %v503 = vsel %vm477, %v466, 0
    %v506 = vsel %vm477, %v467, 0
    %v509 = vsel %vm477, %v468, 0
    %v512 = vsel %vm477, %v469, 0
    %v515 = vsel %vm477, %v470, 0
    %v518 = vsel %vm477, %v471, 0
    %v521 = vsel %vm477, %v472, 0
    %v524 = vsel %vm477, %v473, 0
    %526 = vmatpush.msra.mxu0 0.0
    %527 = vmatpush.msra.mxu0 %v107
    %528 = vmatpush.msra.mxu0 %v106
    %529 = vmatpush.msra.mxu0 %v105
    %530 = vmatpush.msra.mxu0 %v104
    %531 = vmatpush.msra.mxu0 %v103
    %532 = vmatpush.msra.mxu0 %v102
    %533 = vmatpush.msra.mxu0 %v101
    %534 = vmatpush.msra.mxu0 %v100
    %535 = vmatpush.msra.mxu0 %v99
    %536 = vmatpush.msra.mxu0 %v98
    %537 = vmatpush.msra.mxu0 %v97
    %538 = vmatpush.msra.mxu0 %v96
    %539 = vmatpush.msra.mxu0 %v95
    %540 = vmatpush.msra.mxu0 %v94
    %541 = vmatpush.msra.mxu0 %v93
    %542 = vmatmul.f32.gmra.mxu0 %v479
    %v543 = vpop.f32.mrf.mxu0
    %v544 = vadd.f32 %v475, %v543
    %545 = vmatmul.f32.gmra.mxu0 %v482
    %v546 = vpop.f32.mrf.mxu0
    %v547 = vadd.f32 %v475, %v546
    %548 = vmatmul.f32.gmra.mxu0 %v485
    %v549 = vpop.f32.mrf.mxu0
    %v550 = vadd.f32 %v475, %v549
    %551 = vmatmul.f32.gmra.mxu0 %v488
    %v552 = vpop.f32.mrf.mxu0
    %v553 = vadd.f32 %v475, %v552
    %554 = vmatmul.f32.gmra.mxu0 %v491
    %v555 = vpop.f32.mrf.mxu0
    %v556 = vadd.f32 %v475, %v555
    %557 = vmatmul.f32.gmra.mxu0 %v494
    %v558 = vpop.f32.mrf.mxu0
    %v559 = vadd.f32 %v475, %v558
    %560 = vmatmul.f32.gmra.mxu0 %v497
    %v561 = vpop.f32.mrf.mxu0
    %v562 = vadd.f32 %v475, %v561
    %563 = vmatmul.f32.gmra.mxu0 %v500
    %v564 = vpop.f32.mrf.mxu0
    %v565 = vadd.f32 %v475, %v564
    %566 = vmatmul.f32.gmra.mxu0 %v503
    %v567 = vpop.f32.mrf.mxu0
    %v568 = vadd.f32 %v475, %v567
    %569 = vmatmul.f32.gmra.mxu0 %v506
    %v570 = vpop.f32.mrf.mxu0
    %v571 = vadd.f32 %v475, %v570
    %572 = vmatmul.f32.gmra.mxu0 %v509
    %v573 = vpop.f32.mrf.mxu0
    %v574 = vadd.f32 %v475, %v573
    %575 = vmatmul.f32.gmra.mxu0 %v512
    %v576 = vpop.f32.mrf.mxu0
    %v577 = vadd.f32 %v475, %v576
    %578 = vmatmul.f32.gmra.mxu0 %v515
    %v579 = vpop.f32.mrf.mxu0
    %v580 = vadd.f32 %v475, %v579
    %581 = vmatmul.f32.gmra.mxu0 %v518
    %v582 = vpop.f32.mrf.mxu0
    %v583 = vadd.f32 %v475, %v582
    %584 = vmatmul.f32.gmra.mxu0 %v521
    %v585 = vpop.f32.mrf.mxu0
    %v586 = vadd.f32 %v475, %v585
    %587 = vmatmul.f32.gmra.mxu0 %v524
    %v588 = vpop.f32.mrf.mxu0
    %v589 = vadd.f32 %v475, %v588
    %590 = vdwg.mxu0
    %v591 = vmax.f32 %v544, 0.0
    %v592 = vmax.f32 %v547, 0.0
    %v593 = vmax.f32 %v550, 0.0
    %v594 = vmax.f32 %v553, 0.0
    %v595 = vmax.f32 %v556, 0.0
    %v596 = vmax.f32 %v559, 0.0
    %v597 = vmax.f32 %v562, 0.0
    %v598 = vmax.f32 %v565, 0.0
    %v599 = vmax.f32 %v568, 0.0
    %v600 = vmax.f32 %v571, 0.0
    %v601 = vmax.f32 %v574, 0.0
    %v602 = vmax.f32 %v577, 0.0
    %v603 = vmax.f32 %v580, 0.0
    %v604 = vmax.f32 %v583, 0.0
    %v605 = vmax.f32 %v586, 0.0
    %v606 = vmax.f32 %v589, 0.0
    %vm607 = vcmask 1031168
    %v609 = vsel %vm607, %v57, 0
    %v612 = vsel %vm607, %v58, 0
    %v615 = vsel %vm607, %v59, 0
    %v618 = vsel %vm607, %v60, 0
    %v621 = vsel %vm607, %v61, 0
    %v624 = vsel %vm607, %v62, 0
    %v627 = vsel %vm607, %v63, 0
    %v630 = vsel %vm607, %v64, 0
    %v633 = vsel %vm607, %v65, 0
    %v636 = vsel %vm607, %v66, 0
    %v639 = vsel %vm607, %v67, 0
    %v642 = vsel %vm607, %v68, 0
    %v645 = vsel %vm607, %v69, 0
    %v648 = vsel %vm607, %v70, 0
    %v651 = vsel %vm607, %v71, 0
    %v654 = vsel %vm607, %v72, 0
    %v657 = vsel %vm607, %v73, 0
    %v660 = vsel %vm607, %v74, 0
    %v663 = vsel %vm607, %v75, 0
    %v666 = vsel %vm607, %v76, 0
    %v669 = vsel %vm607, %v77, 0
    %v672 = vsel %vm607, %v78, 0
    %v675 = vsel %vm607, %v79, 0
    %v678 = vsel %vm607, %v80, 0
    %v681 = vsel %vm360, %v606, 0
    %683 = vmatpush.msra.mxu0 %v681
    %684 = vmatpush.msra.mxu0 %v605
    %685 = vmatpush.msra.mxu0 %v604
    %686 = vmatpush.msra.mxu0 %v603
    %687 = vmatpush.msra.mxu0 %v602
    %688 = vmatpush.msra.mxu0 %v601
    %689 = vmatpush.msra.mxu0 %v600
    %690 = vmatpush.msra.mxu0 %v599
    %691 = vmatpush.msra.mxu0 %v598
    %692 = vmatpush.msra.mxu0 %v597
    %693 = vmatpush.msra.mxu0 %v596
    %694 = vmatpush.msra.mxu0 %v595
    %695 = vmatpush.msra.mxu0 %v594
    %696 = vmatpush.msra.mxu0 %v593
    %697 = vmatpush.msra.mxu0 %v592
    %698 = vmatpush.msra.mxu0 %v591
    %699 = vmatmul.f32.gmra.mxu0 %v609
    %v700 = vpop.f32.mrf.mxu0
    %v701 = vadd.f32 0.0, %v700
    %702 = vmatmul.f32.gmra.mxu0 %v612
    %v703 = vpop.f32.mrf.mxu0
    %v704 = vadd.f32 0.0, %v703
    %705 = vmatmul.f32.gmra.mxu0 %v615
    %v706 = vpop.f32.mrf.mxu0
    %v707 = vadd.f32 0.0, %v706
    %708 = vmatmul.f32.gmra.mxu0 %v618
    %v709 = vpop.f32.mrf.mxu0
    %v710 = vadd.f32 0.0, %v709
    %711 = vmatmul.f32.gmra.mxu0 %v621
    %v712 = vpop.f32.mrf.mxu0
    %v713 = vadd.f32 0.0, %v712
    %714 = vmatmul.f32.gmra.mxu0 %v624
    %v715 = vpop.f32.mrf.mxu0
    %v716 = vadd.f32 0.0, %v715
    %717 = vmatmul.f32.gmra.mxu0 %v627
    %v718 = vpop.f32.mrf.mxu0
    %v719 = vadd.f32 0.0, %v718
    %720 = vmatmul.f32.gmra.mxu0 %v630
    %v721 = vpop.f32.mrf.mxu0
    %v722 = vadd.f32 0.0, %v721
    %723 = vmatmul.f32.gmra.mxu0 %v633
    %v724 = vpop.f32.mrf.mxu0
    %v725 = vadd.f32 0.0, %v724
    %726 = vmatmul.f32.gmra.mxu0 %v636
    %v727 = vpop.f32.mrf.mxu0
    %v728 = vadd.f32 0.0, %v727
    %729 = vmatmul.f32.gmra.mxu0 %v639
    %v730 = vpop.f32.mrf.mxu0
    %v731 = vadd.f32 0.0, %v730
    %732 = vmatmul.f32.gmra.mxu0 %v642
    %v733 = vpop.f32.mrf.mxu0
    %v734 = vadd.f32 0.0, %v733
    %735 = vmatmul.f32.gmra.mxu0 %v645
    %v736 = vpop.f32.mrf.mxu0
    %v737 = vadd.f32 0.0, %v736
    %738 = vmatmul.f32.gmra.mxu0 %v648
    %v739 = vpop.f32.mrf.mxu0
    %v740 = vadd.f32 0.0, %v739
    %741 = vmatmul.f32.gmra.mxu0 %v651
    %v742 = vpop.f32.mrf.mxu0
    %v743 = vadd.f32 0.0, %v742
    %744 = vmatmul.f32.gmra.mxu0 %v654
    %v745 = vpop.f32.mrf.mxu0
    %v746 = vadd.f32 0.0, %v745
    %747 = vmatmul.f32.gmra.mxu0 %v657
    %v748 = vpop.f32.mrf.mxu0
    %v749 = vadd.f32 0.0, %v748
    %750 = vmatmul.f32.gmra.mxu0 %v660
    %v751 = vpop.f32.mrf.mxu0
    %v752 = vadd.f32 0.0, %v751
    %753 = vmatmul.f32.gmra.mxu0 %v663
    %v754 = vpop.f32.mrf.mxu0
    %v755 = vadd.f32 0.0, %v754
    %756 = vmatmul.f32.gmra.mxu0 %v666
    %v757 = vpop.f32.mrf.mxu0
    %v758 = vadd.f32 0.0, %v757
    %759 = vmatmul.f32.gmra.mxu0 %v669
    %v760 = vpop.f32.mrf.mxu0
    %v761 = vadd.f32 0.0, %v760
    %762 = vmatmul.f32.gmra.mxu0 %v672
    %v763 = vpop.f32.mrf.mxu0
    %v764 = vadd.f32 0.0, %v763
    %765 = vmatmul.f32.gmra.mxu0 %v675
    %v766 = vpop.f32.mrf.mxu0
    %v767 = vadd.f32 0.0, %v766
    %768 = vmatmul.f32.gmra.mxu0 %v678
    %v769 = vpop.f32.mrf.mxu0
    %v770 = vadd.f32 0.0, %v769
    %771 = vdwg.mxu0
    %v781 = vrot.slane %v722, 7
    %v782 = vrot.slane %v725, 7
    %v783 = vsel %vm228, %v781, %v782
    %v784 = vrot.slane %v728, 7
    %v785 = vsel %vm228, %v782, %v784
    %v786 = vrot.slane %v731, 7
    %v787 = vsel %vm228, %v784, %v786
    %v788 = vrot.slane %v734, 7
    %v789 = vsel %vm228, %v786, %v788
    %v790 = vrot.slane %v737, 7
    %v791 = vsel %vm228, %v788, %v790
    %v792 = vrot.slane %v740, 7
    %v793 = vsel %vm228, %v790, %v792
    %v794 = vrot.slane %v743, 7
    %v795 = vsel %vm228, %v792, %v794
    %v796 = vrot.slane %v746, 7
    %v797 = vsel %vm228, %v794, %v796
    %798 = vrot.lane.b32.xlu0 %v783, 24
    %v799 = vpop.permute.xlu0 %798
    %800 = vrot.lane.b32.xlu0 %v785, 24
    %v801 = vpop.permute.xlu0 %800
    %802 = vrot.lane.b32.xlu0 %v787, 24
    %v803 = vpop.permute.xlu0 %802
    %804 = vrot.lane.b32.xlu0 %v789, 24
    %v805 = vpop.permute.xlu0 %804
    %806 = vrot.lane.b32.xlu0 %v791, 24
    %v807 = vpop.permute.xlu0 %806
    %808 = vrot.lane.b32.xlu0 %v793, 24
    %v809 = vpop.permute.xlu0 %808
    %810 = vrot.lane.b32.xlu0 %v795, 24
    %v811 = vpop.permute.xlu0 %810
    %812 = vrot.lane.b32.xlu0 %v797, 24
    %v813 = vpop.permute.xlu0 %812
    %vm830 = vcmask 1041408
    %v831 = vrot.slane %v746, 6
    %v832 = vrot.slane %v749, 6
    %v833 = vsel %vm830, %v831, %v832
    %v834 = vrot.slane %v752, 6
    %v835 = vsel %vm830, %v832, %v834
    %v836 = vrot.slane %v755, 6
    %v837 = vsel %vm830, %v834, %v836
    %v838 = vrot.slane %v758, 6
    %v839 = vsel %vm830, %v836, %v838
    %v840 = vrot.slane %v761, 6
    %v841 = vsel %vm830, %v838, %v840
    %v842 = vrot.slane %v764, 6
    %v843 = vsel %vm830, %v840, %v842
    %v844 = vrot.slane %v767, 6
    %v845 = vsel %vm830, %v842, %v844
    %v846 = vrot.slane %v770, 6
    %v847 = vsel %vm830, %v844, %v846
    %848 = vrot.lane.b32.xlu0 %v833, 48
    %v849 = vpop.permute.xlu0 %848
    %850 = vrot.lane.b32.xlu0 %v835, 48
    %v851 = vpop.permute.xlu0 %850
    %852 = vrot.lane.b32.xlu0 %v837, 48
    %v853 = vpop.permute.xlu0 %852
    %854 = vrot.lane.b32.xlu0 %v839, 48
    %v855 = vpop.permute.xlu0 %854
    %856 = vrot.lane.b32.xlu0 %v841, 48
    %v857 = vpop.permute.xlu0 %856
    %858 = vrot.lane.b32.xlu0 %v843, 48
    %v859 = vpop.permute.xlu0 %858
    %860 = vrot.lane.b32.xlu0 %v845, 48
    %v861 = vpop.permute.xlu0 %860
    %862 = vrot.lane.b32.xlu0 %v847, 48
    %v863 = vpop.permute.xlu0 %862
    %vm872 = vcmask 195584
    %v873 = vsel %vm872, %v701, %v799
    %v874 = vsel %vm872, %v704, %v801
    %v875 = vsel %vm872, %v707, %v803
    %v876 = vsel %vm872, %v710, %v805
    %v877 = vsel %vm872, %v713, %v807
    %v878 = vsel %vm872, %v716, %v809
    %v879 = vsel %vm872, %v719, %v811
    %v880 = vsel %vm872, %v722, %v813
    %vm881 = vcmask 392192
    %v882 = vsel %vm881, %v873, %v849
    %v883 = vsel %vm881, %v874, %v851
    %v884 = vsel %vm881, %v875, %v853
    %v885 = vsel %vm881, %v876, %v855
    %v886 = vsel %vm881, %v877, %v857
    %v887 = vsel %vm881, %v878, %v859
    %v888 = vsel %vm881, %v879, %v861
    %v889 = vsel %vm881, %v880, %v863
    %v891 = vperm.slane %v118, 0
    %vm893 = vcmask 588800
    %v895 = vsel %vm893, %v882, 0
    %v898 = vsel %vm893, %v883, 0
    %v901 = vsel %vm893, %v884, 0
    %v904 = vsel %vm893, %v885, 0
    %v907 = vsel %vm893, %v886, 0
    %v910 = vsel %vm893, %v887, 0
    %v913 = vsel %vm893, %v888, 0
    %v916 = vsel %vm893, %v889, 0
    %918 = vmatpush.msra.mxu0 0.0
    %919 = vmatpush.msra.mxu0 0.0
    %920 = vmatpush.msra.mxu0 0.0
    %921 = vmatpush.msra.mxu0 0.0
    %922 = vmatpush.msra.mxu0 0.0
    %923 = vmatpush.msra.mxu0 0.0
    %924 = vmatpush.msra.mxu0 0.0
    %925 = vmatpush.msra.mxu0 %v117
    %926 = vmatpush.msra.mxu0 %v116
    %927 = vmatpush.msra.mxu0 %v115
    %928 = vmatpush.msra.mxu0 %v114
    %929 = vmatpush.msra.mxu0 %v113
    %930 = vmatpush.msra.mxu0 %v112
    %931 = vmatpush.msra.mxu0 %v111
    %932 = vmatpush.msra.mxu0 %v110
    %933 = vmatpush.msra.mxu0 %v109
    %934 = vmatmul.f32.gmra.mxu0 %v895
    %v935 = vpop.f32.mrf.mxu0
    %v936 = vadd.f32 %v891, %v935
    %937 = vmatmul.f32.gmra.mxu0 %v898
    %v938 = vpop.f32.mrf.mxu0
    %v939 = vadd.f32 %v891, %v938
    %940 = vmatmul.f32.gmra.mxu0 %v901
    %v941 = vpop.f32.mrf.mxu0
    %v942 = vadd.f32 %v891, %v941
    %943 = vmatmul.f32.gmra.mxu0 %v904
    %v944 = vpop.f32.mrf.mxu0
    %v945 = vadd.f32 %v891, %v944
    %946 = vmatmul.f32.gmra.mxu0 %v907
    %v947 = vpop.f32.mrf.mxu0
    %v948 = vadd.f32 %v891, %v947
    %949 = vmatmul.f32.gmra.mxu0 %v910
    %v950 = vpop.f32.mrf.mxu0
    %v951 = vadd.f32 %v891, %v950
    %952 = vmatmul.f32.gmra.mxu0 %v913
    %v953 = vpop.f32.mrf.mxu0
    %v954 = vadd.f32 %v891, %v953
    %955 = vmatmul.f32.gmra.mxu0 %v916
    %v956 = vpop.f32.mrf.mxu0
    %v957 = vadd.f32 %v891, %v956
    %958 = vdwg.mxu0
    %v959 = vmax.f32 %v936, 0.0
    %v960 = vmax.f32 %v939, 0.0
    %v961 = vmax.f32 %v942, 0.0
    %v962 = vmax.f32 %v945, 0.0
    %v963 = vmax.f32 %v948, 0.0
    %v964 = vmax.f32 %v951, 0.0
    %v965 = vmax.f32 %v954, 0.0
    %v966 = vmax.f32 %v957, 0.0
    %v975 = vrot.slane %v959, 7
    %v976 = vrot.slane %v960, 7
    %v977 = vsel %vm228, %v975, %v976
    %v978 = vrot.slane %v961, 7
    %v979 = vsel %vm228, %v976, %v978
    %v980 = vrot.slane %v962, 7
    %v981 = vsel %vm228, %v978, %v980
    %v982 = vrot.slane %v963, 7
    %v983 = vsel %vm228, %v980, %v982
    %v984 = vrot.slane %v964, 7
    %v985 = vsel %vm228, %v982, %v984
    %v986 = vrot.slane %v965, 7
    %v987 = vsel %vm228, %v984, %v986
    %v988 = vrot.slane %v966, 7
    %v989 = vsel %vm228, %v986, %v988
    %v998 = vsel %vm228, 0.0, %v975
    %v1000 = vrot.slane %v998, 1
    %v1001 = vrot.slane %v977, 1
    %v1002 = vsel %vm277, %v1000, %v1001
    %v1003 = vrot.slane %v979, 1
    %v1004 = vsel %vm277, %v1001, %v1003
    %v1005 = vrot.slane %v981, 1
    %v1006 = vsel %vm277, %v1003, %v1005
    %v1007 = vrot.slane %v983, 1
    %v1008 = vsel %vm277, %v1005, %v1007
    %v1009 = vrot.slane %v985, 1
    %v1010 = vsel %vm277, %v1007, %v1009
    %v1011 = vrot.slane %v987, 1
    %v1012 = vsel %vm277, %v1009, %v1011
    %v1013 = vrot.slane %v989, 1
    %v1014 = vsel %vm277, %v1011, %v1013
    %1015 = vrot.lane.b32.xlu0 %v1002, 32
    %v1016 = vpop.permute.xlu0 %1015
    %1017 = vrot.lane.b32.xlu0 %v1004, 32
    %v1018 = vpop.permute.xlu0 %1017
    %1019 = vrot.lane.b32.xlu0 %v1006, 32
    %v1020 = vpop.permute.xlu0 %1019
    %1021 = vrot.lane.b32.xlu0 %v1008, 32
    %v1022 = vpop.permute.xlu0 %1021
    %1023 = vrot.lane.b32.xlu0 %v1010, 32
    %v1024 = vpop.permute.xlu0 %1023
    %1025 = vrot.lane.b32.xlu0 %v1012, 32
    %v1026 = vpop.permute.xlu0 %1025
    %1027 = vrot.lane.b32.xlu0 %v1014, 32
    %v1028 = vpop.permute.xlu0 %1027
    %1029 = vrot.lane.b32.xlu0 %v1013, 32
    %v1030 = vpop.permute.xlu0 %1029
    %v1040 = vrot.slane %v998, 2
    %v1041 = vrot.slane %v977, 2
    %v1042 = vsel %vm360, %v1040, %v1041
    %v1043 = vrot.slane %v979, 2
    %v1044 = vsel %vm360, %v1041, %v1043
    %v1045 = vrot.slane %v981, 2
    %v1046 = vsel %vm360, %v1043, %v1045
    %v1047 = vrot.slane %v983, 2
    %v1048 = vsel %vm360, %v1045, %v1047
    %v1049 = vrot.slane %v985, 2
    %v1050 = vsel %vm360, %v1047, %v1049
    %v1051 = vrot.slane %v987, 2
    %v1052 = vsel %vm360, %v1049, %v1051
    %v1053 = vrot.slane %v989, 2
    %v1054 = vsel %vm360, %v1051, %v1053
    %v1055 = vrot.slane 0.0, 2
    %v1056 = vsel %vm360, %v1053, %v1055
    %1057 = vrot.lane.b32.xlu0 %v1042, 64
    %v1058 = vpop.permute.xlu0 %1057
    %1059 = vrot.lane.b32.xlu0 %v1044, 64
    %v1060 = vpop.permute.xlu0 %1059
    %1061 = vrot.lane.b32.xlu0 %v1046, 64
    %v1062 = vpop.permute.xlu0 %1061
    %1063 = vrot.lane.b32.xlu0 %v1048, 64
    %v1064 = vpop.permute.xlu0 %1063
    %1065 = vrot.lane.b32.xlu0 %v1050, 64
    %v1066 = vpop.permute.xlu0 %1065
    %1067 = vrot.lane.b32.xlu0 %v1052, 64
    %v1068 = vpop.permute.xlu0 %1067
    %1069 = vrot.lane.b32.xlu0 %v1054, 64
    %v1070 = vpop.permute.xlu0 %1069
    %1071 = vrot.lane.b32.xlu0 %v1056, 64
    %v1072 = vpop.permute.xlu0 %1071
    %vm1081 = vcmask 261120
    %v1082 = vsel %vm1081, %v998, %v1016
    %v1083 = vsel %vm1081, %v977, %v1018
    %v1084 = vsel %vm1081, %v979, %v1020
    %v1085 = vsel %vm1081, %v981, %v1022
    %v1086 = vsel %vm1081, %v983, %v1024
    %v1087 = vsel %vm1081, %v985, %v1026
    %v1088 = vsel %vm1081, %v987, %v1028
    %v1089 = vsel %vm1081, %v989, %v1030
    %vm1090 = vcmask 523264
    %v1091 = vsel %vm1090, %v1082, %v1058
    %v1092 = vsel %vm1090, %v1083, %v1060
    %v1093 = vsel %vm1090, %v1084, %v1062
    %v1094 = vsel %vm1090, %v1085, %v1064
    %v1095 = vsel %vm1090, %v1086, %v1066
    %v1096 = vsel %vm1090, %v1087, %v1068
    %v1097 = vsel %vm1090, %v1088, %v1070
    %v1098 = vsel %vm1090, %v1089, %v1072
    %v1100 = vperm.slane %v131, 0
    %vm1102 = vcmask 785408
    %v1104 = vsel %vm1102, %v1091, 0
    %v1107 = vsel %vm1102, %v1092, 0
    %v1110 = vsel %vm1102, %v1093, 0
    %v1113 = vsel %vm1102, %v1094, 0
    %v1116 = vsel %vm1102, %v1095, 0
    %v1119 = vsel %vm1102, %v1096, 0
    %v1122 = vsel %vm1102, %v1097, 0
    %v1125 = vsel %vm1102, %v1098, 0
    %1127 = vmatpush.msra.mxu0 0.0
    %1128 = vmatpush.msra.mxu0 0.0
    %1129 = vmatpush.msra.mxu0 0.0
    %1130 = vmatpush.msra.mxu0 0.0
    %1131 = vmatpush.msra.mxu0 %v130
    %1132 = vmatpush.msra.mxu0 %v129
    %1133 = vmatpush.msra.mxu0 %v128
    %1134 = vmatpush.msra.mxu0 %v127
    %1135 = vmatpush.msra.mxu0 %v126
    %1136 = vmatpush.msra.mxu0 %v125
    %1137 = vmatpush.msra.mxu0 %v124
    %1138 = vmatpush.msra.mxu0 %v123
    %1139 = vmatpush.msra.mxu0 %v122
    %1140 = vmatpush.msra.mxu0 %v121
    %1141 = vmatpush.msra.mxu0 %v120
    %1142 = vmatpush.msra.mxu0 %v119
    %1143 = vmatmul.f32.gmra.mxu0 %v1104
    %v1144 = vpop.f32.mrf.mxu0
    %v1145 = vadd.f32 %v1100, %v1144
    %1146 = vmatmul.f32.gmra.mxu0 %v1107
    %v1147 = vpop.f32.mrf.mxu0
    %v1148 = vadd.f32 %v1100, %v1147
    %1149 = vmatmul.f32.gmra.mxu0 %v1110
    %v1150 = vpop.f32.mrf.mxu0
    %v1151 = vadd.f32 %v1100, %v1150
    %1152 = vmatmul.f32.gmra.mxu0 %v1113
    %v1153 = vpop.f32.mrf.mxu0
    %v1154 = vadd.f32 %v1100, %v1153
    %1155 = vmatmul.f32.gmra.mxu0 %v1116
    %v1156 = vpop.f32.mrf.mxu0
    %v1157 = vadd.f32 %v1100, %v1156
    %1158 = vmatmul.f32.gmra.mxu0 %v1119
    %v1159 = vpop.f32.mrf.mxu0
    %v1160 = vadd.f32 %v1100, %v1159
    %1161 = vmatmul.f32.gmra.mxu0 %v1122
    %v1162 = vpop.f32.mrf.mxu0
    %v1163 = vadd.f32 %v1100, %v1162
    %1164 = vmatmul.f32.gmra.mxu0 %v1125
    %v1165 = vpop.f32.mrf.mxu0
    %v1166 = vadd.f32 %v1100, %v1165
    %1167 = vdwg.mxu0
    %1176 = vrot.lane.b32.xlu0 %v936, 96
    %v1177 = vpop.permute.xlu0 %1176
    %1178 = vrot.lane.b32.xlu0 %v939, 96
    %v1179 = vpop.permute.xlu0 %1178
    %1180 = vrot.lane.b32.xlu0 %v942, 96
    %v1181 = vpop.permute.xlu0 %1180
    %1182 = vrot.lane.b32.xlu0 %v945, 96
    %v1183 = vpop.permute.xlu0 %1182
    %1184 = vrot.lane.b32.xlu0 %v948, 96
    %v1185 = vpop.permute.xlu0 %1184
    %1186 = vrot.lane.b32.xlu0 %v951, 96
    %v1187 = vpop.permute.xlu0 %1186
    %1188 = vrot.lane.b32.xlu0 %v954, 96
    %v1189 = vpop.permute.xlu0 %1188
    %1190 = vrot.lane.b32.xlu0 %v957, 96
    %v1191 = vpop.permute.xlu0 %1190
    %v1200 = vadd.f32 %v1145, %v1177
    %v1201 = vadd.f32 %v1148, %v1179
    %v1202 = vadd.f32 %v1151, %v1181
    %v1203 = vadd.f32 %v1154, %v1183
    %v1204 = vadd.f32 %v1157, %v1185
    %v1205 = vadd.f32 %v1160, %v1187
    %v1206 = vadd.f32 %v1163, %v1189
    %v1207 = vadd.f32 %v1166, %v1191
    %v1208 = vmax.f32 %v1200, 0.0
    %v1209 = vmax.f32 %v1201, 0.0
    %v1210 = vmax.f32 %v1202, 0.0
    %v1211 = vmax.f32 %v1203, 0.0
    %v1212 = vmax.f32 %v1204, 0.0
    %v1213 = vmax.f32 %v1205, 0.0
    %v1214 = vmax.f32 %v1206, 0.0
    %v1215 = vmax.f32 %v1207, 0.0
    %vm1216 = vcmask 515072
    %v1218 = vsel %vm1216, %v81, 0
    %v1221 = vsel %vm1216, %v82, 0
    %v1224 = vsel %vm1216, %v83, 0
    %v1227 = vsel %vm1216, %v84, 0
    %v1230 = vsel %vm1216, %v85, 0
    %v1233 = vsel %vm1216, %v86, 0
    %v1236 = vsel %vm1216, %v87, 0
    %v1239 = vsel %vm1216, %v88, 0
    %v1242 = vsel %vm1216, %v89, 0
    %v1245 = vsel %vm1216, %v90, 0
    %v1248 = vsel %vm1216, %v91, 0
    %v1251 = vsel %vm1216, %v92, 0
    %v1254 = vsel %vm277, %v1215, 0
    %1256 = vmatpush.msra.mxu0 0.0
    %1257 = vmatpush.msra.mxu0 0.0
    %1258 = vmatpush.msra.mxu0 0.0
    %1259 = vmatpush.msra.mxu0 0.0
    %1260 = vmatpush.msra.mxu0 0.0
    %1261 = vmatpush.msra.mxu0 0.0
    %1262 = vmatpush.msra.mxu0 0.0
    %1263 = vmatpush.msra.mxu0 0.0
    %1264 = vmatpush.msra.mxu0 %v1254
    %1265 = vmatpush.msra.mxu0 %v1214
    %1266 = vmatpush.msra.mxu0 %v1213
    %1267 = vmatpush.msra.mxu0 %v1212
    %1268 = vmatpush.msra.mxu0 %v1211
    %1269 = vmatpush.msra.mxu0 %v1210
    %1270 = vmatpush.msra.mxu0 %v1209
    %1271 = vmatpush.msra.mxu0 %v1208
    %1272 = vmatmul.f32.gmra.mxu0 %v1218
    %v1273 = vpop.f32.mrf.mxu0
    %v1274 = vadd.f32 0.0, %v1273
    %1275 = vmatmul.f32.gmra.mxu0 %v1221
    %v1276 = vpop.f32.mrf.mxu0
    %v1277 = vadd.f32 0.0, %v1276
    %1278 = vmatmul.f32.gmra.mxu0 %v1224
    %v1279 = vpop.f32.mrf.mxu0
    %v1280 = vadd.f32 0.0, %v1279
    %1281 = vmatmul.f32.gmra.mxu0 %v1227
    %v1282 = vpop.f32.mrf.mxu0
    %v1283 = vadd.f32 0.0, %v1282
    %1284 = vmatmul.f32.gmra.mxu0 %v1230
    %v1285 = vpop.f32.mrf.mxu0
    %v1286 = vadd.f32 0.0, %v1285
    %1287 = vmatmul.f32.gmra.mxu0 %v1233
    %v1288 = vpop.f32.mrf.mxu0
    %v1289 = vadd.f32 0.0, %v1288
    %1290 = vmatmul.f32.gmra.mxu0 %v1236
    %v1291 = vpop.f32.mrf.mxu0
    %v1292 = vadd.f32 0.0, %v1291
    %1293 = vmatmul.f32.gmra.mxu0 %v1239
    %v1294 = vpop.f32.mrf.mxu0
    %v1295 = vadd.f32 0.0, %v1294
    %1296 = vmatmul.f32.gmra.mxu0 %v1242
    %v1297 = vpop.f32.mrf.mxu0
    %v1298 = vadd.f32 0.0, %v1297
    %1299 = vmatmul.f32.gmra.mxu0 %v1245
    %v1300 = vpop.f32.mrf.mxu0
    %v1301 = vadd.f32 0.0, %v1300
    %1302 = vmatmul.f32.gmra.mxu0 %v1248
    %v1303 = vpop.f32.mrf.mxu0
    %v1304 = vadd.f32 0.0, %v1303
    %1305 = vmatmul.f32.gmra.mxu0 %v1251
    %v1306 = vpop.f32.mrf.mxu0
    %v1307 = vadd.f32 0.0, %v1306
    %1308 = vdwg.mxu0
    %1313 = vrot.lane.b32.xlu0 %v1286, 32
    %v1314 = vpop.permute.xlu0 %1313
    %1315 = vrot.lane.b32.xlu0 %v1289, 32
    %v1316 = vpop.permute.xlu0 %1315
    %1317 = vrot.lane.b32.xlu0 %v1292, 32
    %v1318 = vpop.permute.xlu0 %1317
    %1319 = vrot.lane.b32.xlu0 %v1295, 32
    %v1320 = vpop.permute.xlu0 %1319
    %1329 = vrot.lane.b32.xlu0 %v1298, 64
    %v1330 = vpop.permute.xlu0 %1329
    %1331 = vrot.lane.b32.xlu0 %v1301, 64
    %v1332 = vpop.permute.xlu0 %1331
    %1333 = vrot.lane.b32.xlu0 %v1304, 64
    %v1334 = vpop.permute.xlu0 %1333
    %1335 = vrot.lane.b32.xlu0 %v1307, 64
    %v1336 = vpop.permute.xlu0 %1335
    %v1341 = vsel %vm1081, %v1274, %v1314
    %v1342 = vsel %vm1081, %v1277, %v1316
    %v1343 = vsel %vm1081, %v1280, %v1318
    %v1344 = vsel %vm1081, %v1283, %v1320
    %v1345 = vsel %vm1090, %v1341, %v1330
    %v1346 = vsel %vm1090, %v1342, %v1332
    %v1347 = vsel %vm1090, %v1343, %v1334
    %v1348 = vsel %vm1090, %v1344, %v1336
    %v1350 = vperm.slane %v144, 0
    %v1353 = vsel %vm1102, %v1345, 0
    %v1356 = vsel %vm1102, %v1346, 0
    %v1359 = vsel %vm1102, %v1347, 0
    %v1362 = vsel %vm1102, %v1348, 0
    %1364 = vmatpush.msra.mxu0 0.0
    %1365 = vmatpush.msra.mxu0 0.0
    %1366 = vmatpush.msra.mxu0 0.0
    %1367 = vmatpush.msra.mxu0 0.0
    %1368 = vmatpush.msra.mxu0 %v143
    %1369 = vmatpush.msra.mxu0 %v142
    %1370 = vmatpush.msra.mxu0 %v141
    %1371 = vmatpush.msra.mxu0 %v140
    %1372 = vmatpush.msra.mxu0 %v139
    %1373 = vmatpush.msra.mxu0 %v138
    %1374 = vmatpush.msra.mxu0 %v137
    %1375 = vmatpush.msra.mxu0 %v136
    %1376 = vmatpush.msra.mxu0 %v135
    %1377 = vmatpush.msra.mxu0 %v134
    %1378 = vmatpush.msra.mxu0 %v133
    %1379 = vmatpush.msra.mxu0 %v132
    %1380 = vmatmul.f32.gmra.mxu0 %v1353
    %v1381 = vpop.f32.mrf.mxu0
    %v1382 = vadd.f32 %v1350, %v1381
    %1383 = vmatmul.f32.gmra.mxu0 %v1356
    %v1384 = vpop.f32.mrf.mxu0
    %v1385 = vadd.f32 %v1350, %v1384
    %1386 = vmatmul.f32.gmra.mxu0 %v1359
    %v1387 = vpop.f32.mrf.mxu0
    %v1388 = vadd.f32 %v1350, %v1387
    %1389 = vmatmul.f32.gmra.mxu0 %v1362
    %v1390 = vpop.f32.mrf.mxu0
    %v1391 = vadd.f32 %v1350, %v1390
    %1392 = vdwg.mxu0
    %v1393 = vmax.f32 %v1382, 0.0
    %v1394 = vmax.f32 %v1385, 0.0
    %v1395 = vmax.f32 %v1388, 0.0
    %v1396 = vmax.f32 %v1391, 0.0
    %v1401 = vrot.slane %v1393, 7
    %v1402 = vrot.slane %v1394, 7
    %v1403 = vsel %vm228, %v1401, %v1402
    %v1404 = vrot.slane %v1395, 7
    %v1405 = vsel %vm228, %v1402, %v1404
    %v1406 = vrot.slane %v1396, 7
    %v1407 = vsel %vm228, %v1404, %v1406
    %v1413 = vsel %vm228, 0.0, %v1401
    %v1414 = vsel %vm228, %v1406, 0.0
    %v1417 = vrot.slane %v1413, 1
    %v1418 = vrot.slane %v1403, 1
    %v1419 = vsel %vm277, %v1417, %v1418
    %v1420 = vrot.slane %v1405, 1
    %v1421 = vsel %vm277, %v1418, %v1420
    %v1422 = vrot.slane %v1407, 1
    %v1423 = vsel %vm277, %v1420, %v1422
    %v1424 = vrot.slane %v1414, 1
    %v1425 = vsel %vm277, %v1422, %v1424
    %1426 = vrot.lane.b32.xlu0 %v1419, 48
    %v1427 = vpop.permute.xlu0 %1426
    %1428 = vrot.lane.b32.xlu0 %v1421, 48
    %v1429 = vpop.permute.xlu0 %1428
    %1430 = vrot.lane.b32.xlu0 %v1423, 48
    %v1431 = vpop.permute.xlu0 %1430
    %1432 = vrot.lane.b32.xlu0 %v1425, 48
    %v1433 = vpop.permute.xlu0 %1432
    %v1438 = vrot.slane %v1413, 2
    %v1439 = vrot.slane %v1403, 2
    %v1440 = vsel %vm360, %v1438, %v1439
    %v1441 = vrot.slane %v1405, 2
    %v1442 = vsel %vm360, %v1439, %v1441
    %v1443 = vrot.slane %v1407, 2
    %v1444 = vsel %vm360, %v1441, %v1443
    %v1445 = vrot.slane %v1414, 2
    %v1446 = vsel %vm360, %v1443, %v1445
    %1447 = vrot.lane.b32.xlu0 %v1440, 96
    %v1448 = vpop.permute.xlu0 %1447
    %1449 = vrot.lane.b32.xlu0 %v1442, 96
    %v1450 = vpop.permute.xlu0 %1449
    %1451 = vrot.lane.b32.xlu0 %v1444, 96
    %v1452 = vpop.permute.xlu0 %1451
    %1453 = vrot.lane.b32.xlu0 %v1446, 96
    %v1454 = vpop.permute.xlu0 %1453
    %v1459 = vsel %vm881, %v1413, %v1427
    %v1460 = vsel %vm881, %v1403, %v1429
    %v1461 = vsel %vm881, %v1405, %v1431
    %v1462 = vsel %vm881, %v1407, %v1433
    %v1463 = vsel %vm1102, %v1459, %v1448
    %v1464 = vsel %vm1102, %v1460, %v1450
    %v1465 = vsel %vm1102, %v1461, %v1452
    %v1466 = vsel %vm1102, %v1462, %v1454
    %v1468 = vperm.slane %v163, 0
    %vm1470 = vcmask 130048
    %v1471 = vsel %vm1470, %v1448, 0
    %v1473 = vsel %vm1470, %v1450, 0
    %v1475 = vsel %vm1470, %v1452, 0
    %v1477 = vsel %vm1470, %v1454, 0
    %1479 = vmatpush.msra.mxu0 %v160
    %1480 = vmatpush.msra.mxu0 %v159
    %1481 = vmatpush.msra.mxu0 %v158
    %1482 = vmatpush.msra.mxu0 %v157
    %1483 = vmatpush.msra.mxu0 %v156
    %1484 = vmatpush.msra.mxu0 %v155
    %1485 = vmatpush.msra.mxu0 %v154
    %1486 = vmatpush.msra.mxu0 %v153
    %1487 = vmatpush.msra.mxu0 %v152
    %1488 = vmatpush.msra.mxu0 %v151
    %1489 = vmatpush.msra.mxu0 %v150
    %1490 = vmatpush.msra.mxu0 %v149
    %1491 = vmatpush.msra.mxu0 %v148
    %1492 = vmatpush.msra.mxu0 %v147
    %1493 = vmatpush.msra.mxu0 %v146
    %1494 = vmatpush.msra.mxu0 %v145
    %1495 = vmatmul.f32.gmra.mxu0 %v1463
    %v1496 = vpop.f32.mrf.mxu0
    %v1497 = vadd.f32 %v1468, %v1496
    %1498 = vmatmul.f32.gmra.mxu0 %v1464
    %v1499 = vpop.f32.mrf.mxu0
    %v1500 = vadd.f32 %v1468, %v1499
    %1501 = vmatmul.f32.gmra.mxu0 %v1465
    %v1502 = vpop.f32.mrf.mxu0
    %v1503 = vadd.f32 %v1468, %v1502
    %1504 = vmatmul.f32.gmra.mxu0 %v1466
    %v1505 = vpop.f32.mrf.mxu0
    %v1506 = vadd.f32 %v1468, %v1505
    %1507 = vdwg.mxu0
    %1508 = vmatpush.msra.mxu0 0.0
    %1509 = vmatpush.msra.mxu0 0.0
    %1510 = vmatpush.msra.mxu0 0.0
    %1511 = vmatpush.msra.mxu0 0.0
    %1512 = vmatpush.msra.mxu0 0.0
    %1513 = vmatpush.msra.mxu0 0.0
    %1514 = vmatpush.msra.mxu0 0.0
    %1515 = vmatpush.msra.mxu0 0.0
    %1516 = vmatpush.msra.mxu0 0.0
    %1517 = vmatpush.msra.mxu0 0.0
    %1518 = vmatpush.msra.mxu0 0.0
    %1519 = vmatpush.msra.mxu0 0.0
    %1520 = vmatpush.msra.mxu0 0.0
    %1521 = vmatpush.msra.mxu0 0.0
    %1522 = vmatpush.msra.mxu0 %v162
    %1523 = vmatpush.msra.mxu0 %v161
    %1524 = vmatmul.f32.gmra.mxu0 %v1471
    %v1525 = vpop.f32.mrf.mxu0
    %v1526 = vadd.f32 %v1497, %v1525
    %1527 = vmatmul.f32.gmra.mxu0 %v1473
    %v1528 = vpop.f32.mrf.mxu0
    %v1529 = vadd.f32 %v1500, %v1528
    %1530 = vmatmul.f32.gmra.mxu0 %v1475
    %v1531 = vpop.f32.mrf.mxu0
    %v1532 = vadd.f32 %v1503, %v1531
    %1533 = vmatmul.f32.gmra.mxu0 %v1477
    %v1534 = vpop.f32.mrf.mxu0
    %v1535 = vadd.f32 %v1506, %v1534
    %1536 = vdwg.mxu0
    %1541 = vrot.lane.b32.xlu0 %v1382, 80
    %v1542 = vpop.permute.xlu0 %1541
    %1543 = vrot.lane.b32.xlu0 %v1385, 80
    %v1544 = vpop.permute.xlu0 %1543
    %1545 = vrot.lane.b32.xlu0 %v1388, 80
    %v1546 = vpop.permute.xlu0 %1545
    %1547 = vrot.lane.b32.xlu0 %v1391, 80
    %v1548 = vpop.permute.xlu0 %1547
    %v1553 = vadd.f32 %v1526, %v1542
    %v1554 = vadd.f32 %v1529, %v1544
    %v1555 = vadd.f32 %v1532, %v1546
    %v1556 = vadd.f32 %v1535, %v1548
    %v1557 = vmax.f32 %v1553, 0.0
    %v1558 = vmax.f32 %v1554, 0.0
    %v1559 = vmax.f32 %v1555, 0.0
    %v1560 = vmax.f32 %v1556, 0.0
    %v1561 = vsel %vm881, %v1557, 0.0
    %v1562 = vsel %vm881, %v1558, 0.0
    %v1563 = vadd.f32 %v1561, %v1562
    %v1564 = vsel %vm881, %v1559, 0.0
    %v1565 = vadd.f32 %v1563, %v1564
    %v1566 = vsel %vm881, %v1560, 0.0
    %v1567 = vadd.f32 %v1565, %v1566
    %v1568 = vrot.slane %v1567, 4
    %v1569 = vadd.f32 %v1567, %v1568
    %v1570 = vrot.slane %v1569, 2
    %v1571 = vadd.f32 %v1569, %v1570
    %v1572 = vrot.slane %v1571, 1
    %v1573 = vadd.f32 %v1571, %v1572
    %v1574 = vrcp.pop 32.0
    %v1575 = vmul.f32 32.0, %v1574
    %v1576 = vsub.f32 1.0, %v1575
    %v1577 = vmul.f32 %v1574, %v1576
    %v1578 = vadd.f32 %v1574, %v1577
    %vm1579 = vweird.f32 %v1574
    %v1580 = vsel %vm1579, %v1574, %v1578
    %v1581 = vmul.f32 %v1573, %v1580
    %v1583 = vsel %vm881, %v1581, 0
    %1585 = vmatpush.msra.mxu0 0.0
    %1586 = vmatpush.msra.mxu0 0.0
    %1587 = vmatpush.msra.mxu0 0.0
    %1588 = vmatpush.msra.mxu0 0.0
    %1589 = vmatpush.msra.mxu0 0.0
    %1590 = vmatpush.msra.mxu0 0.0
    %1591 = vmatpush.msra.mxu0 0.0
    %1592 = vmatpush.msra.mxu0 0.0
    %1593 = vmatpush.msra.mxu0 0.0
    %1594 = vmatpush.msra.mxu0 0.0
    %1595 = vmatpush.msra.mxu0 %v169
    %1596 = vmatpush.msra.mxu0 %v168
    %1597 = vmatpush.msra.mxu0 %v167
    %1598 = vmatpush.msra.mxu0 %v166
    %1599 = vmatpush.msra.mxu0 %v165
    %1600 = vmatpush.msra.mxu0 %v164
    %1601 = vmatmul.f32.gmra.mxu0 %v1583
    %v1602 = vpop.f32.mrf.mxu0
    %v1603 = vadd.f32 %v170, %v1602
    %1604 = vdwg.mxu0
    %v1605 = vmax.f32 %v1603, 0.0
    %v1607 = vsel %vm1090, %v1605, 0
    %1609 = vmatpush.msra.mxu0 0.0
    %1610 = vmatpush.msra.mxu0 0.0
    %1611 = vmatpush.msra.mxu0 0.0
    %1612 = vmatpush.msra.mxu0 0.0
    %1613 = vmatpush.msra.mxu0 0.0
    %1614 = vmatpush.msra.mxu0 0.0
    %1615 = vmatpush.msra.mxu0 0.0
    %1616 = vmatpush.msra.mxu0 0.0
    %1617 = vmatpush.msra.mxu0 %v178
    %1618 = vmatpush.msra.mxu0 %v177
    %1619 = vmatpush.msra.mxu0 %v176
    %1620 = vmatpush.msra.mxu0 %v175
    %1621 = vmatpush.msra.mxu0 %v174
    %1622 = vmatpush.msra.mxu0 %v173
    %1623 = vmatpush.msra.mxu0 %v172
    %1624 = vmatpush.msra.mxu0 %v171
    %1625 = vmatmul.f32.gmra.mxu0 %v1607
    %v1626 = vpop.f32.mrf.mxu0
    %v1627 = vadd.f32 %v179, %v1626
    %1628 = vdwg.mxu0
    %v1645 = vrot.slane %v196, 7
    %v1646 = vrot.slane %v197, 7
    %v1647 = vsel %vm228, %v1645, %v1646
    %v1648 = vrot.slane %v198, 7
    %v1649 = vsel %vm228, %v1646, %v1648
    %v1650 = vrot.slane %v199, 7
    %v1651 = vsel %vm228, %v1648, %v1650
    %v1652 = vrot.slane %v200, 7
    %v1653 = vsel %vm228, %v1650, %v1652
    %v1654 = vrot.slane %v201, 7
    %v1655 = vsel %vm228, %v1652, %v1654
    %v1656 = vrot.slane %v202, 7
    %v1657 = vsel %vm228, %v1654, %v1656
    %v1658 = vrot.slane %v203, 7
    %v1659 = vsel %vm228, %v1656, %v1658
    %v1660 = vrot.slane %v204, 7
    %v1661 = vsel %vm228, %v1658, %v1660
    %v1662 = vrot.slane %v205, 7
    %v1663 = vsel %vm228, %v1660, %v1662
    %v1664 = vrot.slane %v206, 7
    %v1665 = vsel %vm228, %v1662, %v1664
    %v1666 = vrot.slane %v207, 7
    %v1667 = vsel %vm228, %v1664, %v1666
    %v1668 = vrot.slane %v208, 7
    %v1669 = vsel %vm228, %v1666, %v1668
    %v1670 = vrot.slane %v209, 7
    %v1671 = vsel %vm228, %v1668, %v1670
    %v1672 = vrot.slane %v210, 7
    %v1673 = vsel %vm228, %v1670, %v1672
    %v1674 = vrot.slane %v211, 7
    %v1675 = vsel %vm228, %v1672, %v1674
    %v1692 = vsel %vm228, 0.0, %v1645
    %v1693 = vsel %vm277, %v1675, 0.0
    %v1696 = vrot.slane %v1692, 1
    %v1697 = vrot.slane %v1647, 1
    %v1698 = vsel %vm277, %v1696, %v1697
    %v1699 = vrot.slane %v1649, 1
    %v1700 = vsel %vm277, %v1697, %v1699
    %v1701 = vrot.slane %v1651, 1
    %v1702 = vsel %vm277, %v1699, %v1701
    %v1703 = vrot.slane %v1653, 1
    %v1704 = vsel %vm277, %v1701, %v1703
    %v1705 = vrot.slane %v1655, 1
    %v1706 = vsel %vm277, %v1703, %v1705
    %v1707 = vrot.slane %v1657, 1
    %v1708 = vsel %vm277, %v1705, %v1707
    %v1709 = vrot.slane %v1659, 1
    %v1710 = vsel %vm277, %v1707, %v1709
    %v1711 = vrot.slane %v1661, 1
    %v1712 = vsel %vm277, %v1709, %v1711
    %v1713 = vrot.slane %v1663, 1
    %v1714 = vsel %vm277, %v1711, %v1713
    %v1715 = vrot.slane %v1665, 1
    %v1716 = vsel %vm277, %v1713, %v1715
    %v1717 = vrot.slane %v1667, 1
    %v1718 = vsel %vm277, %v1715, %v1717
    %v1719 = vrot.slane %v1669, 1
    %v1720 = vsel %vm277, %v1717, %v1719
    %v1721 = vrot.slane %v1671, 1
    %v1722 = vsel %vm277, %v1719, %v1721
    %v1723 = vrot.slane %v1673, 1
    %v1724 = vsel %vm277, %v1721, %v1723
    %v1725 = vrot.slane %v1693, 1
    %v1726 = vsel %vm277, %v1723, %v1725
    %1727 = vrot.lane.b32.xlu0 %v1698, 40
    %v1728 = vpop.permute.xlu0 %1727
    %1729 = vrot.lane.b32.xlu0 %v1700, 40
    %v1730 = vpop.permute.xlu0 %1729
    %1731 = vrot.lane.b32.xlu0 %v1702, 40
    %v1732 = vpop.permute.xlu0 %1731
    %1733 = vrot.lane.b32.xlu0 %v1704, 40
    %v1734 = vpop.permute.xlu0 %1733
    %1735 = vrot.lane.b32.xlu0 %v1706, 40
    %v1736 = vpop.permute.xlu0 %1735
    %1737 = vrot.lane.b32.xlu0 %v1708, 40
    %v1738 = vpop.permute.xlu0 %1737
    %1739 = vrot.lane.b32.xlu0 %v1710, 40
    %v1740 = vpop.permute.xlu0 %1739
    %1741 = vrot.lane.b32.xlu0 %v1712, 40
    %v1742 = vpop.permute.xlu0 %1741
    %1743 = vrot.lane.b32.xlu0 %v1714, 40
    %v1744 = vpop.permute.xlu0 %1743
    %1745 = vrot.lane.b32.xlu0 %v1716, 40
    %v1746 = vpop.permute.xlu0 %1745
    %1747 = vrot.lane.b32.xlu0 %v1718, 40
    %v1748 = vpop.permute.xlu0 %1747
    %1749 = vrot.lane.b32.xlu0 %v1720, 40
    %v1750 = vpop.permute.xlu0 %1749
    %1751 = vrot.lane.b32.xlu0 %v1722, 40
    %v1752 = vpop.permute.xlu0 %1751
    %1753 = vrot.lane.b32.xlu0 %v1724, 40
    %v1754 = vpop.permute.xlu0 %1753
    %1755 = vrot.lane.b32.xlu0 %v1726, 40
    %v1756 = vpop.permute.xlu0 %1755
    %1757 = vrot.lane.b32.xlu0 %v1725, 40
    %v1758 = vpop.permute.xlu0 %1757
    %v1775 = vrot.slane %v1692, 2
    %v1776 = vrot.slane %v1647, 2
    %v1777 = vsel %vm360, %v1775, %v1776
    %v1778 = vrot.slane %v1649, 2
    %v1779 = vsel %vm360, %v1776, %v1778
    %v1780 = vrot.slane %v1651, 2
    %v1781 = vsel %vm360, %v1778, %v1780
    %v1782 = vrot.slane %v1653, 2
    %v1783 = vsel %vm360, %v1780, %v1782
    %v1784 = vrot.slane %v1655, 2
    %v1785 = vsel %vm360, %v1782, %v1784
    %v1786 = vrot.slane %v1657, 2
    %v1787 = vsel %vm360, %v1784, %v1786
    %v1788 = vrot.slane %v1659, 2
    %v1789 = vsel %vm360, %v1786, %v1788
    %v1790 = vrot.slane %v1661, 2
    %v1791 = vsel %vm360, %v1788, %v1790
    %v1792 = vrot.slane %v1663, 2
    %v1793 = vsel %vm360, %v1790, %v1792
    %v1794 = vrot.slane %v1665, 2
    %v1795 = vsel %vm360, %v1792, %v1794
    %v1796 = vrot.slane %v1667, 2
    %v1797 = vsel %vm360, %v1794, %v1796
    %v1798 = vrot.slane %v1669, 2
    %v1799 = vsel %vm360, %v1796, %v1798
    %v1800 = vrot.slane %v1671, 2
    %v1801 = vsel %vm360, %v1798, %v1800
    %v1802 = vrot.slane %v1673, 2
    %v1803 = vsel %vm360, %v1800, %v1802
    %v1804 = vrot.slane %v1693, 2
    %v1805 = vsel %vm360, %v1802, %v1804
    %1806 = vrot.lane.b32.xlu0 %v1777, 80
    %v1807 = vpop.permute.xlu0 %1806
    %1808 = vrot.lane.b32.xlu0 %v1779, 80
    %v1809 = vpop.permute.xlu0 %1808
    %1810 = vrot.lane.b32.xlu0 %v1781, 80
    %v1811 = vpop.permute.xlu0 %1810
    %1812 = vrot.lane.b32.xlu0 %v1783, 80
    %v1813 = vpop.permute.xlu0 %1812
    %1814 = vrot.lane.b32.xlu0 %v1785, 80
    %v1815 = vpop.permute.xlu0 %1814
    %1816 = vrot.lane.b32.xlu0 %v1787, 80
    %v1817 = vpop.permute.xlu0 %1816
    %1818 = vrot.lane.b32.xlu0 %v1789, 80
    %v1819 = vpop.permute.xlu0 %1818
    %1820 = vrot.lane.b32.xlu0 %v1791, 80
    %v1821 = vpop.permute.xlu0 %1820
    %1822 = vrot.lane.b32.xlu0 %v1793, 80
    %v1823 = vpop.permute.xlu0 %1822
    %1824 = vrot.lane.b32.xlu0 %v1795, 80
    %v1825 = vpop.permute.xlu0 %1824
    %1826 = vrot.lane.b32.xlu0 %v1797, 80
    %v1827 = vpop.permute.xlu0 %1826
    %1828 = vrot.lane.b32.xlu0 %v1799, 80
    %v1829 = vpop.permute.xlu0 %1828
    %1830 = vrot.lane.b32.xlu0 %v1801, 80
    %v1831 = vpop.permute.xlu0 %1830
    %1832 = vrot.lane.b32.xlu0 %v1803, 80
    %v1833 = vpop.permute.xlu0 %1832
    %1834 = vrot.lane.b32.xlu0 %v1805, 80
    %v1835 = vpop.permute.xlu0 %1834
    %1836 = vrot.lane.b32.xlu0 %v1804, 80
    %v1837 = vpop.permute.xlu0 %1836
    %v1854 = vsel %vm440, %v1692, %v1728
    %v1855 = vsel %vm440, %v1647, %v1730
    %v1856 = vsel %vm440, %v1649, %v1732
    %v1857 = vsel %vm440, %v1651, %v1734
    %v1858 = vsel %vm440, %v1653, %v1736
    %v1859 = vsel %vm440, %v1655, %v1738
    %v1860 = vsel %vm440, %v1657, %v1740
    %v1861 = vsel %vm440, %v1659, %v1742
    %v1862 = vsel %vm440, %v1661, %v1744
    %v1863 = vsel %vm440, %v1663, %v1746
    %v1864 = vsel %vm440, %v1665, %v1748
    %v1865 = vsel %vm440, %v1667, %v1750
    %v1866 = vsel %vm440, %v1669, %v1752
    %v1867 = vsel %vm440, %v1671, %v1754
    %v1868 = vsel %vm440, %v1673, %v1756
    %v1869 = vsel %vm440, %v1693, %v1758
    %v1870 = vsel %vm457, %v1854, %v1807
    %v1871 = vsel %vm457, %v1855, %v1809
    %v1872 = vsel %vm457, %v1856, %v1811
    %v1873 = vsel %vm457, %v1857, %v1813
    %v1874 = vsel %vm457, %v1858, %v1815
    %v1875 = vsel %vm457, %v1859, %v1817
    %v1876 = vsel %vm457, %v1860, %v1819
    %v1877 = vsel %vm457, %v1861, %v1821
    %v1878 = vsel %vm457, %v1862, %v1823
    %v1879 = vsel %vm457, %v1863, %v1825
    %v1880 = vsel %vm457, %v1864, %v1827
    %v1881 = vsel %vm457, %v1865, %v1829
    %v1882 = vsel %vm457, %v1866, %v1831
    %v1883 = vsel %vm457, %v1867, %v1833
    %v1884 = vsel %vm457, %v1868, %v1835
    %v1885 = vsel %vm457, %v1869, %v1837
    %v1887 = vsel %vm477, %v1870, 0
    %v1890 = vsel %vm477, %v1871, 0
    %v1893 = vsel %vm477, %v1872, 0
    %v1896 = vsel %vm477, %v1873, 0
    %v1899 = vsel %vm477, %v1874, 0
    %v1902 = vsel %vm477, %v1875, 0
    %v1905 = vsel %vm477, %v1876, 0
    %v1908 = vsel %vm477, %v1877, 0
    %v1911 = vsel %vm477, %v1878, 0
    %v1914 = vsel %vm477, %v1879, 0
    %v1917 = vsel %vm477, %v1880, 0
    %v1920 = vsel %vm477, %v1881, 0
    %v1923 = vsel %vm477, %v1882, 0
    %v1926 = vsel %vm477, %v1883, 0
    %v1929 = vsel %vm477, %v1884, 0
    %v1932 = vsel %vm477, %v1885, 0
    %1934 = vmatpush.msra.mxu0 0.0
    %1935 = vmatpush.msra.mxu0 %v107
    %1936 = vmatpush.msra.mxu0 %v106
    %1937 = vmatpush.msra.mxu0 %v105
    %1938 = vmatpush.msra.mxu0 %v104
    %1939 = vmatpush.msra.mxu0 %v103
    %1940 = vmatpush.msra.mxu0 %v102
    %1941 = vmatpush.msra.mxu0 %v101
    %1942 = vmatpush.msra.mxu0 %v100
    %1943 = vmatpush.msra.mxu0 %v99
    %1944 = vmatpush.msra.mxu0 %v98
    %1945 = vmatpush.msra.mxu0 %v97
    %1946 = vmatpush.msra.mxu0 %v96
    %1947 = vmatpush.msra.mxu0 %v95
    %1948 = vmatpush.msra.mxu0 %v94
    %1949 = vmatpush.msra.mxu0 %v93
    %1950 = vmatmul.f32.gmra.mxu0 %v1887
    %v1951 = vpop.f32.mrf.mxu0
    %v1952 = vadd.f32 %v475, %v1951
    %1953 = vmatmul.f32.gmra.mxu0 %v1890
    %v1954 = vpop.f32.mrf.mxu0
    %v1955 = vadd.f32 %v475, %v1954
    %1956 = vmatmul.f32.gmra.mxu0 %v1893
    %v1957 = vpop.f32.mrf.mxu0
    %v1958 = vadd.f32 %v475, %v1957
    %1959 = vmatmul.f32.gmra.mxu0 %v1896
    %v1960 = vpop.f32.mrf.mxu0
    %v1961 = vadd.f32 %v475, %v1960
    %1962 = vmatmul.f32.gmra.mxu0 %v1899
    %v1963 = vpop.f32.mrf.mxu0
    %v1964 = vadd.f32 %v475, %v1963
    %1965 = vmatmul.f32.gmra.mxu0 %v1902
    %v1966 = vpop.f32.mrf.mxu0
    %v1967 = vadd.f32 %v475, %v1966
    %1968 = vmatmul.f32.gmra.mxu0 %v1905
    %v1969 = vpop.f32.mrf.mxu0
    %v1970 = vadd.f32 %v475, %v1969
    %1971 = vmatmul.f32.gmra.mxu0 %v1908
    %v1972 = vpop.f32.mrf.mxu0
    %v1973 = vadd.f32 %v475, %v1972
    %1974 = vmatmul.f32.gmra.mxu0 %v1911
    %v1975 = vpop.f32.mrf.mxu0
    %v1976 = vadd.f32 %v475, %v1975
    %1977 = vmatmul.f32.gmra.mxu0 %v1914
    %v1978 = vpop.f32.mrf.mxu0
    %v1979 = vadd.f32 %v475, %v1978
    %1980 = vmatmul.f32.gmra.mxu0 %v1917
    %v1981 = vpop.f32.mrf.mxu0
    %v1982 = vadd.f32 %v475, %v1981
    %1983 = vmatmul.f32.gmra.mxu0 %v1920
    %v1984 = vpop.f32.mrf.mxu0
    %v1985 = vadd.f32 %v475, %v1984
    %1986 = vmatmul.f32.gmra.mxu0 %v1923
    %v1987 = vpop.f32.mrf.mxu0
    %v1988 = vadd.f32 %v475, %v1987
    %1989 = vmatmul.f32.gmra.mxu0 %v1926
    %v1990 = vpop.f32.mrf.mxu0
    %v1991 = vadd.f32 %v475, %v1990
    %1992 = vmatmul.f32.gmra.mxu0 %v1929
    %v1993 = vpop.f32.mrf.mxu0
    %v1994 = vadd.f32 %v475, %v1993
    %1995 = vmatmul.f32.gmra.mxu0 %v1932
    %v1996 = vpop.f32.mrf.mxu0
    %v1997 = vadd.f32 %v475, %v1996
    %1998 = vdwg.mxu0
    %v1999 = vmax.f32 %v1952, 0.0
    %v2000 = vmax.f32 %v1955, 0.0
    %v2001 = vmax.f32 %v1958, 0.0
    %v2002 = vmax.f32 %v1961, 0.0
    %v2003 = vmax.f32 %v1964, 0.0
    %v2004 = vmax.f32 %v1967, 0.0
    %v2005 = vmax.f32 %v1970, 0.0
    %v2006 = vmax.f32 %v1973, 0.0
    %v2007 = vmax.f32 %v1976, 0.0
    %v2008 = vmax.f32 %v1979, 0.0
    %v2009 = vmax.f32 %v1982, 0.0
    %v2010 = vmax.f32 %v1985, 0.0
    %v2011 = vmax.f32 %v1988, 0.0
    %v2012 = vmax.f32 %v1991, 0.0
    %v2013 = vmax.f32 %v1994, 0.0
    %v2014 = vmax.f32 %v1997, 0.0
    %v2016 = vsel %vm360, %v2014, 0
    %2018 = vmatpush.msra.mxu0 %v2016
    %2019 = vmatpush.msra.mxu0 %v2013
    %2020 = vmatpush.msra.mxu0 %v2012
    %2021 = vmatpush.msra.mxu0 %v2011
    %2022 = vmatpush.msra.mxu0 %v2010
    %2023 = vmatpush.msra.mxu0 %v2009
    %2024 = vmatpush.msra.mxu0 %v2008
    %2025 = vmatpush.msra.mxu0 %v2007
    %2026 = vmatpush.msra.mxu0 %v2006
    %2027 = vmatpush.msra.mxu0 %v2005
    %2028 = vmatpush.msra.mxu0 %v2004
    %2029 = vmatpush.msra.mxu0 %v2003
    %2030 = vmatpush.msra.mxu0 %v2002
    %2031 = vmatpush.msra.mxu0 %v2001
    %2032 = vmatpush.msra.mxu0 %v2000
    %2033 = vmatpush.msra.mxu0 %v1999
    %2034 = vmatmul.f32.gmra.mxu0 %v609
    %v2035 = vpop.f32.mrf.mxu0
    %v2036 = vadd.f32 0.0, %v2035
    %2037 = vmatmul.f32.gmra.mxu0 %v612
    %v2038 = vpop.f32.mrf.mxu0
    %v2039 = vadd.f32 0.0, %v2038
    %2040 = vmatmul.f32.gmra.mxu0 %v615
    %v2041 = vpop.f32.mrf.mxu0
    %v2042 = vadd.f32 0.0, %v2041
    %2043 = vmatmul.f32.gmra.mxu0 %v618
    %v2044 = vpop.f32.mrf.mxu0
    %v2045 = vadd.f32 0.0, %v2044
    %2046 = vmatmul.f32.gmra.mxu0 %v621
    %v2047 = vpop.f32.mrf.mxu0
    %v2048 = vadd.f32 0.0, %v2047
    %2049 = vmatmul.f32.gmra.mxu0 %v624
    %v2050 = vpop.f32.mrf.mxu0
    %v2051 = vadd.f32 0.0, %v2050
    %2052 = vmatmul.f32.gmra.mxu0 %v627
    %v2053 = vpop.f32.mrf.mxu0
    %v2054 = vadd.f32 0.0, %v2053
    %2055 = vmatmul.f32.gmra.mxu0 %v630
    %v2056 = vpop.f32.mrf.mxu0
    %v2057 = vadd.f32 0.0, %v2056
    %2058 = vmatmul.f32.gmra.mxu0 %v633
    %v2059 = vpop.f32.mrf.mxu0
    %v2060 = vadd.f32 0.0, %v2059
    %2061 = vmatmul.f32.gmra.mxu0 %v636
    %v2062 = vpop.f32.mrf.mxu0
    %v2063 = vadd.f32 0.0, %v2062
    %2064 = vmatmul.f32.gmra.mxu0 %v639
    %v2065 = vpop.f32.mrf.mxu0
    %v2066 = vadd.f32 0.0, %v2065
    %2067 = vmatmul.f32.gmra.mxu0 %v642
    %v2068 = vpop.f32.mrf.mxu0
    %v2069 = vadd.f32 0.0, %v2068
    %2070 = vmatmul.f32.gmra.mxu0 %v645
    %v2071 = vpop.f32.mrf.mxu0
    %v2072 = vadd.f32 0.0, %v2071
    %2073 = vmatmul.f32.gmra.mxu0 %v648
    %v2074 = vpop.f32.mrf.mxu0
    %v2075 = vadd.f32 0.0, %v2074
    %2076 = vmatmul.f32.gmra.mxu0 %v651
    %v2077 = vpop.f32.mrf.mxu0
    %v2078 = vadd.f32 0.0, %v2077
    %2079 = vmatmul.f32.gmra.mxu0 %v654
    %v2080 = vpop.f32.mrf.mxu0
    %v2081 = vadd.f32 0.0, %v2080
    %2082 = vmatmul.f32.gmra.mxu0 %v657
    %v2083 = vpop.f32.mrf.mxu0
    %v2084 = vadd.f32 0.0, %v2083
    %2085 = vmatmul.f32.gmra.mxu0 %v660
    %v2086 = vpop.f32.mrf.mxu0
    %v2087 = vadd.f32 0.0, %v2086
    %2088 = vmatmul.f32.gmra.mxu0 %v663
    %v2089 = vpop.f32.mrf.mxu0
    %v2090 = vadd.f32 0.0, %v2089
    %2091 = vmatmul.f32.gmra.mxu0 %v666
    %v2092 = vpop.f32.mrf.mxu0
    %v2093 = vadd.f32 0.0, %v2092
    %2094 = vmatmul.f32.gmra.mxu0 %v669
    %v2095 = vpop.f32.mrf.mxu0
    %v2096 = vadd.f32 0.0, %v2095
    %2097 = vmatmul.f32.gmra.mxu0 %v672
    %v2098 = vpop.f32.mrf.mxu0
    %v2099 = vadd.f32 0.0, %v2098
    %2100 = vmatmul.f32.gmra.mxu0 %v675
    %v2101 = vpop.f32.mrf.mxu0
    %v2102 = vadd.f32 0.0, %v2101
    %2103 = vmatmul.f32.gmra.mxu0 %v678
    %v2104 = vpop.f32.mrf.mxu0
    %v2105 = vadd.f32 0.0, %v2104
    %2106 = vdwg.mxu0
    %v2116 = vrot.slane %v2057, 7
    %v2117 = vrot.slane %v2060, 7
    %v2118 = vsel %vm228, %v2116, %v2117
    %v2119 = vrot.slane %v2063, 7
    %v2120 = vsel %vm228, %v2117, %v2119
    %v2121 = vrot.slane %v2066, 7
    %v2122 = vsel %vm228, %v2119, %v2121
    %v2123 = vrot.slane %v2069, 7
    %v2124 = vsel %vm228, %v2121, %v2123
    %v2125 = vrot.slane %v2072, 7
    %v2126 = vsel %vm228, %v2123, %v2125
    %v2127 = vrot.slane %v2075, 7
    %v2128 = vsel %vm228, %v2125, %v2127
    %v2129 = vrot.slane %v2078, 7
    %v2130 = vsel %vm228, %v2127, %v2129
    %v2131 = vrot.slane %v2081, 7
    %v2132 = vsel %vm228, %v2129, %v2131
    %2133 = vrot.lane.b32.xlu0 %v2118, 24
    %v2134 = vpop.permute.xlu0 %2133
    %2135 = vrot.lane.b32.xlu0 %v2120, 24
    %v2136 = vpop.permute.xlu0 %2135
    %2137 = vrot.lane.b32.xlu0 %v2122, 24
    %v2138 = vpop.permute.xlu0 %2137
    %2139 = vrot.lane.b32.xlu0 %v2124, 24
    %v2140 = vpop.permute.xlu0 %2139
    %2141 = vrot.lane.b32.xlu0 %v2126, 24
    %v2142 = vpop.permute.xlu0 %2141
    %2143 = vrot.lane.b32.xlu0 %v2128, 24
    %v2144 = vpop.permute.xlu0 %2143
    %2145 = vrot.lane.b32.xlu0 %v2130, 24
    %v2146 = vpop.permute.xlu0 %2145
    %2147 = vrot.lane.b32.xlu0 %v2132, 24
    %v2148 = vpop.permute.xlu0 %2147
    %v2165 = vrot.slane %v2081, 6
    %v2166 = vrot.slane %v2084, 6
    %v2167 = vsel %vm830, %v2165, %v2166
    %v2168 = vrot.slane %v2087, 6
    %v2169 = vsel %vm830, %v2166, %v2168
    %v2170 = vrot.slane %v2090, 6
    %v2171 = vsel %vm830, %v2168, %v2170
    %v2172 = vrot.slane %v2093, 6
    %v2173 = vsel %vm830, %v2170, %v2172
    %v2174 = vrot.slane %v2096, 6
    %v2175 = vsel %vm830, %v2172, %v2174
    %v2176 = vrot.slane %v2099, 6
    %v2177 = vsel %vm830, %v2174, %v2176
    %v2178 = vrot.slane %v2102, 6
    %v2179 = vsel %vm830, %v2176, %v2178
    %v2180 = vrot.slane %v2105, 6
    %v2181 = vsel %vm830, %v2178, %v2180
    %2182 = vrot.lane.b32.xlu0 %v2167, 48
    %v2183 = vpop.permute.xlu0 %2182
    %2184 = vrot.lane.b32.xlu0 %v2169, 48
    %v2185 = vpop.permute.xlu0 %2184
    %2186 = vrot.lane.b32.xlu0 %v2171, 48
    %v2187 = vpop.permute.xlu0 %2186
    %2188 = vrot.lane.b32.xlu0 %v2173, 48
    %v2189 = vpop.permute.xlu0 %2188
    %2190 = vrot.lane.b32.xlu0 %v2175, 48
    %v2191 = vpop.permute.xlu0 %2190
    %2192 = vrot.lane.b32.xlu0 %v2177, 48
    %v2193 = vpop.permute.xlu0 %2192
    %2194 = vrot.lane.b32.xlu0 %v2179, 48
    %v2195 = vpop.permute.xlu0 %2194
    %2196 = vrot.lane.b32.xlu0 %v2181, 48
    %v2197 = vpop.permute.xlu0 %2196
    %v2206 = vsel %vm872, %v2036, %v2134
    %v2207 = vsel %vm872, %v2039, %v2136
    %v2208 = vsel %vm872, %v2042, %v2138
    %v2209 = vsel %vm872, %v2045, %v2140
    %v2210 = vsel %vm872, %v2048, %v2142
    %v2211 = vsel %vm872, %v2051, %v2144
    %v2212 = vsel %vm872, %v2054, %v2146
    %v2213 = vsel %vm872, %v2057, %v2148
    %v2214 = vsel %vm881, %v2206, %v2183
    %v2215 = vsel %vm881, %v2207, %v2185
    %v2216 = vsel %vm881, %v2208, %v2187
    %v2217 = vsel %vm881, %v2209, %v2189
    %v2218 = vsel %vm881, %v2210, %v2191
    %v2219 = vsel %vm881, %v2211, %v2193
    %v2220 = vsel %vm881, %v2212, %v2195
    %v2221 = vsel %vm881, %v2213, %v2197
    %v2223 = vsel %vm893, %v2214, 0
    %v2226 = vsel %vm893, %v2215, 0
    %v2229 = vsel %vm893, %v2216, 0
    %v2232 = vsel %vm893, %v2217, 0
    %v2235 = vsel %vm893, %v2218, 0
    %v2238 = vsel %vm893, %v2219, 0
    %v2241 = vsel %vm893, %v2220, 0
    %v2244 = vsel %vm893, %v2221, 0
    %2246 = vmatpush.msra.mxu0 0.0
    %2247 = vmatpush.msra.mxu0 0.0
    %2248 = vmatpush.msra.mxu0 0.0
    %2249 = vmatpush.msra.mxu0 0.0
    %2250 = vmatpush.msra.mxu0 0.0
    %2251 = vmatpush.msra.mxu0 0.0
    %2252 = vmatpush.msra.mxu0 0.0
    %2253 = vmatpush.msra.mxu0 %v117
    %2254 = vmatpush.msra.mxu0 %v116
    %2255 = vmatpush.msra.mxu0 %v115
    %2256 = vmatpush.msra.mxu0 %v114
    %2257 = vmatpush.msra.mxu0 %v113
    %2258 = vmatpush.msra.mxu0 %v112
    %2259 = vmatpush.msra.mxu0 %v111
    %2260 = vmatpush.msra.mxu0 %v110
    %2261 = vmatpush.msra.mxu0 %v109
    %2262 = vmatmul.f32.gmra.mxu0 %v2223
    %v2263 = vpop.f32.mrf.mxu0
    %v2264 = vadd.f32 %v891, %v2263
    %2265 = vmatmul.f32.gmra.mxu0 %v2226
    %v2266 = vpop.f32.mrf.mxu0
    %v2267 = vadd.f32 %v891, %v2266
    %2268 = vmatmul.f32.gmra.mxu0 %v2229
    %v2269 = vpop.f32.mrf.mxu0
    %v2270 = vadd.f32 %v891, %v2269
    %2271 = vmatmul.f32.gmra.mxu0 %v2232
    %v2272 = vpop.f32.mrf.mxu0
    %v2273 = vadd.f32 %v891, %v2272
    %2274 = vmatmul.f32.gmra.mxu0 %v2235
    %v2275 = vpop.f32.mrf.mxu0
    %v2276 = vadd.f32 %v891, %v2275
    %2277 = vmatmul.f32.gmra.mxu0 %v2238
    %v2278 = vpop.f32.mrf.mxu0
    %v2279 = vadd.f32 %v891, %v2278
    %2280 = vmatmul.f32.gmra.mxu0 %v2241
    %v2281 = vpop.f32.mrf.mxu0
    %v2282 = vadd.f32 %v891, %v2281
    %2283 = vmatmul.f32.gmra.mxu0 %v2244
    %v2284 = vpop.f32.mrf.mxu0
    %v2285 = vadd.f32 %v891, %v2284
    %2286 = vdwg.mxu0
    %v2287 = vmax.f32 %v2264, 0.0
    %v2288 = vmax.f32 %v2267, 0.0
    %v2289 = vmax.f32 %v2270, 0.0
    %v2290 = vmax.f32 %v2273, 0.0
    %v2291 = vmax.f32 %v2276, 0.0
    %v2292 = vmax.f32 %v2279, 0.0
    %v2293 = vmax.f32 %v2282, 0.0
    %v2294 = vmax.f32 %v2285, 0.0
    %v2303 = vrot.slane %v2287, 7
    %v2304 = vrot.slane %v2288, 7
    %v2305 = vsel %vm228, %v2303, %v2304
    %v2306 = vrot.slane %v2289, 7
    %v2307 = vsel %vm228, %v2304, %v2306
    %v2308 = vrot.slane %v2290, 7
    %v2309 = vsel %vm228, %v2306, %v2308
    %v2310 = vrot.slane %v2291, 7
    %v2311 = vsel %vm228, %v2308, %v2310
    %v2312 = vrot.slane %v2292, 7
    %v2313 = vsel %vm228, %v2310, %v2312
    %v2314 = vrot.slane %v2293, 7
    %v2315 = vsel %vm228, %v2312, %v2314
    %v2316 = vrot.slane %v2294, 7
    %v2317 = vsel %vm228, %v2314, %v2316
    %v2326 = vsel %vm228, 0.0, %v2303
    %v2328 = vrot.slane %v2326, 1
    %v2329 = vrot.slane %v2305, 1
    %v2330 = vsel %vm277, %v2328, %v2329
    %v2331 = vrot.slane %v2307, 1
    %v2332 = vsel %vm277, %v2329, %v2331
    %v2333 = vrot.slane %v2309, 1
    %v2334 = vsel %vm277, %v2331, %v2333
    %v2335 = vrot.slane %v2311, 1
    %v2336 = vsel %vm277, %v2333, %v2335
    %v2337 = vrot.slane %v2313, 1
    %v2338 = vsel %vm277, %v2335, %v2337
    %v2339 = vrot.slane %v2315, 1
    %v2340 = vsel %vm277, %v2337, %v2339
    %v2341 = vrot.slane %v2317, 1
    %v2342 = vsel %vm277, %v2339, %v2341
    %2343 = vrot.lane.b32.xlu0 %v2330, 32
    %v2344 = vpop.permute.xlu0 %2343
    %2345 = vrot.lane.b32.xlu0 %v2332, 32
    %v2346 = vpop.permute.xlu0 %2345
    %2347 = vrot.lane.b32.xlu0 %v2334, 32
    %v2348 = vpop.permute.xlu0 %2347
    %2349 = vrot.lane.b32.xlu0 %v2336, 32
    %v2350 = vpop.permute.xlu0 %2349
    %2351 = vrot.lane.b32.xlu0 %v2338, 32
    %v2352 = vpop.permute.xlu0 %2351
    %2353 = vrot.lane.b32.xlu0 %v2340, 32
    %v2354 = vpop.permute.xlu0 %2353
    %2355 = vrot.lane.b32.xlu0 %v2342, 32
    %v2356 = vpop.permute.xlu0 %2355
    %2357 = vrot.lane.b32.xlu0 %v2341, 32
    %v2358 = vpop.permute.xlu0 %2357
    %v2367 = vrot.slane %v2326, 2
    %v2368 = vrot.slane %v2305, 2
    %v2369 = vsel %vm360, %v2367, %v2368
    %v2370 = vrot.slane %v2307, 2
    %v2371 = vsel %vm360, %v2368, %v2370
    %v2372 = vrot.slane %v2309, 2
    %v2373 = vsel %vm360, %v2370, %v2372
    %v2374 = vrot.slane %v2311, 2
    %v2375 = vsel %vm360, %v2372, %v2374
    %v2376 = vrot.slane %v2313, 2
    %v2377 = vsel %vm360, %v2374, %v2376
    %v2378 = vrot.slane %v2315, 2
    %v2379 = vsel %vm360, %v2376, %v2378
    %v2380 = vrot.slane %v2317, 2
    %v2381 = vsel %vm360, %v2378, %v2380
    %v2382 = vsel %vm360, %v2380, %v1055
    %2383 = vrot.lane.b32.xlu0 %v2369, 64
    %v2384 = vpop.permute.xlu0 %2383
    %2385 = vrot.lane.b32.xlu0 %v2371, 64
    %v2386 = vpop.permute.xlu0 %2385
    %2387 = vrot.lane.b32.xlu0 %v2373, 64
    %v2388 = vpop.permute.xlu0 %2387
    %2389 = vrot.lane.b32.xlu0 %v2375, 64
    %v2390 = vpop.permute.xlu0 %2389
    %2391 = vrot.lane.b32.xlu0 %v2377, 64
    %v2392 = vpop.permute.xlu0 %2391
    %2393 = vrot.lane.b32.xlu0 %v2379, 64
    %v2394 = vpop.permute.xlu0 %2393
    %2395 = vrot.lane.b32.xlu0 %v2381, 64
    %v2396 = vpop.permute.xlu0 %2395
    %2397 = vrot.lane.b32.xlu0 %v2382, 64
    %v2398 = vpop.permute.xlu0 %2397
    %v2407 = vsel %vm1081, %v2326, %v2344
    %v2408 = vsel %vm1081, %v2305, %v2346
    %v2409 = vsel %vm1081, %v2307, %v2348
    %v2410 = vsel %vm1081, %v2309, %v2350
    %v2411 = vsel %vm1081, %v2311, %v2352
    %v2412 = vsel %vm1081, %v2313, %v2354
    %v2413 = vsel %vm1081, %v2315, %v2356
    %v2414 = vsel %vm1081, %v2317, %v2358
    %v2415 = vsel %vm1090, %v2407, %v2384
    %v2416 = vsel %vm1090, %v2408, %v2386
    %v2417 = vsel %vm1090, %v2409, %v2388
    %v2418 = vsel %vm1090, %v2410, %v2390
    %v2419 = vsel %vm1090, %v2411, %v2392
    %v2420 = vsel %vm1090, %v2412, %v2394
    %v2421 = vsel %vm1090, %v2413, %v2396
    %v2422 = vsel %vm1090, %v2414, %v2398
    %v2424 = vsel %vm1102, %v2415, 0
    %v2427 = vsel %vm1102, %v2416, 0
    %v2430 = vsel %vm1102, %v2417, 0
    %v2433 = vsel %vm1102, %v2418, 0
    %v2436 = vsel %vm1102, %v2419, 0
    %v2439 = vsel %vm1102, %v2420, 0
    %v2442 = vsel %vm1102, %v2421, 0
    %v2445 = vsel %vm1102, %v2422, 0
    %2447 = vmatpush.msra.mxu0 0.0
    %2448 = vmatpush.msra.mxu0 0.0
    %2449 = vmatpush.msra.mxu0 0.0
    %2450 = vmatpush.msra.mxu0 0.0
    %2451 = vmatpush.msra.mxu0 %v130
    %2452 = vmatpush.msra.mxu0 %v129
    %2453 = vmatpush.msra.mxu0 %v128
    %2454 = vmatpush.msra.mxu0 %v127
    %2455 = vmatpush.msra.mxu0 %v126
    %2456 = vmatpush.msra.mxu0 %v125
    %2457 = vmatpush.msra.mxu0 %v124
    %2458 = vmatpush.msra.mxu0 %v123
    %2459 = vmatpush.msra.mxu0 %v122
    %2460 = vmatpush.msra.mxu0 %v121
    %2461 = vmatpush.msra.mxu0 %v120
    %2462 = vmatpush.msra.mxu0 %v119
    %2463 = vmatmul.f32.gmra.mxu0 %v2424
    %v2464 = vpop.f32.mrf.mxu0
    %v2465 = vadd.f32 %v1100, %v2464
    %2466 = vmatmul.f32.gmra.mxu0 %v2427
    %v2467 = vpop.f32.mrf.mxu0
    %v2468 = vadd.f32 %v1100, %v2467
    %2469 = vmatmul.f32.gmra.mxu0 %v2430
    %v2470 = vpop.f32.mrf.mxu0
    %v2471 = vadd.f32 %v1100, %v2470
    %2472 = vmatmul.f32.gmra.mxu0 %v2433
    %v2473 = vpop.f32.mrf.mxu0
    %v2474 = vadd.f32 %v1100, %v2473
    %2475 = vmatmul.f32.gmra.mxu0 %v2436
    %v2476 = vpop.f32.mrf.mxu0
    %v2477 = vadd.f32 %v1100, %v2476
    %2478 = vmatmul.f32.gmra.mxu0 %v2439
    %v2479 = vpop.f32.mrf.mxu0
    %v2480 = vadd.f32 %v1100, %v2479
    %2481 = vmatmul.f32.gmra.mxu0 %v2442
    %v2482 = vpop.f32.mrf.mxu0
    %v2483 = vadd.f32 %v1100, %v2482
    %2484 = vmatmul.f32.gmra.mxu0 %v2445
    %v2485 = vpop.f32.mrf.mxu0
    %v2486 = vadd.f32 %v1100, %v2485
    %2487 = vdwg.mxu0
    %2496 = vrot.lane.b32.xlu0 %v2264, 96
    %v2497 = vpop.permute.xlu0 %2496
    %2498 = vrot.lane.b32.xlu0 %v2267, 96
    %v2499 = vpop.permute.xlu0 %2498
    %2500 = vrot.lane.b32.xlu0 %v2270, 96
    %v2501 = vpop.permute.xlu0 %2500
    %2502 = vrot.lane.b32.xlu0 %v2273, 96
    %v2503 = vpop.permute.xlu0 %2502
    %2504 = vrot.lane.b32.xlu0 %v2276, 96
    %v2505 = vpop.permute.xlu0 %2504
    %2506 = vrot.lane.b32.xlu0 %v2279, 96
    %v2507 = vpop.permute.xlu0 %2506
    %2508 = vrot.lane.b32.xlu0 %v2282, 96
    %v2509 = vpop.permute.xlu0 %2508
    %2510 = vrot.lane.b32.xlu0 %v2285, 96
    %v2511 = vpop.permute.xlu0 %2510
    %v2520 = vadd.f32 %v2465, %v2497
    %v2521 = vadd.f32 %v2468, %v2499
    %v2522 = vadd.f32 %v2471, %v2501
    %v2523 = vadd.f32 %v2474, %v2503
    %v2524 = vadd.f32 %v2477, %v2505
    %v2525 = vadd.f32 %v2480, %v2507
    %v2526 = vadd.f32 %v2483, %v2509
    %v2527 = vadd.f32 %v2486, %v2511
    %v2528 = vmax.f32 %v2520, 0.0
    %v2529 = vmax.f32 %v2521, 0.0
    %v2530 = vmax.f32 %v2522, 0.0
    %v2531 = vmax.f32 %v2523, 0.0
    %v2532 = vmax.f32 %v2524, 0.0
    %v2533 = vmax.f32 %v2525, 0.0
    %v2534 = vmax.f32 %v2526, 0.0
    %v2535 = vmax.f32 %v2527, 0.0
    %v2537 = vsel %vm277, %v2535, 0
    %2539 = vmatpush.msra.mxu0 0.0
    %2540 = vmatpush.msra.mxu0 0.0
    %2541 = vmatpush.msra.mxu0 0.0
    %2542 = vmatpush.msra.mxu0 0.0
    %2543 = vmatpush.msra.mxu0 0.0
    %2544 = vmatpush.msra.mxu0 0.0
    %2545 = vmatpush.msra.mxu0 0.0
    %2546 = vmatpush.msra.mxu0 0.0
    %2547 = vmatpush.msra.mxu0 %v2537
    %2548 = vmatpush.msra.mxu0 %v2534
    %2549 = vmatpush.msra.mxu0 %v2533
    %2550 = vmatpush.msra.mxu0 %v2532
    %2551 = vmatpush.msra.mxu0 %v2531
    %2552 = vmatpush.msra.mxu0 %v2530
    %2553 = vmatpush.msra.mxu0 %v2529
    %2554 = vmatpush.msra.mxu0 %v2528
    %2555 = vmatmul.f32.gmra.mxu0 %v1218
    %v2556 = vpop.f32.mrf.mxu0
    %v2557 = vadd.f32 0.0, %v2556
    %2558 = vmatmul.f32.gmra.mxu0 %v1221
    %v2559 = vpop.f32.mrf.mxu0
    %v2560 = vadd.f32 0.0, %v2559
    %2561 = vmatmul.f32.gmra.mxu0 %v1224
    %v2562 = vpop.f32.mrf.mxu0
    %v2563 = vadd.f32 0.0, %v2562
    %2564 = vmatmul.f32.gmra.mxu0 %v1227
    %v2565 = vpop.f32.mrf.mxu0
    %v2566 = vadd.f32 0.0, %v2565
    %2567 = vmatmul.f32.gmra.mxu0 %v1230
    %v2568 = vpop.f32.mrf.mxu0
    %v2569 = vadd.f32 0.0, %v2568
    %2570 = vmatmul.f32.gmra.mxu0 %v1233
    %v2571 = vpop.f32.mrf.mxu0
    %v2572 = vadd.f32 0.0, %v2571
    %2573 = vmatmul.f32.gmra.mxu0 %v1236
    %v2574 = vpop.f32.mrf.mxu0
    %v2575 = vadd.f32 0.0, %v2574
    %2576 = vmatmul.f32.gmra.mxu0 %v1239
    %v2577 = vpop.f32.mrf.mxu0
    %v2578 = vadd.f32 0.0, %v2577
    %2579 = vmatmul.f32.gmra.mxu0 %v1242
    %v2580 = vpop.f32.mrf.mxu0
    %v2581 = vadd.f32 0.0, %v2580
    %2582 = vmatmul.f32.gmra.mxu0 %v1245
    %v2583 = vpop.f32.mrf.mxu0
    %v2584 = vadd.f32 0.0, %v2583
    %2585 = vmatmul.f32.gmra.mxu0 %v1248
    %v2586 = vpop.f32.mrf.mxu0
    %v2587 = vadd.f32 0.0, %v2586
    %2588 = vmatmul.f32.gmra.mxu0 %v1251
    %v2589 = vpop.f32.mrf.mxu0
    %v2590 = vadd.f32 0.0, %v2589
    %2591 = vdwg.mxu0
    %2596 = vrot.lane.b32.xlu0 %v2569, 32
    %v2597 = vpop.permute.xlu0 %2596
    %2598 = vrot.lane.b32.xlu0 %v2572, 32
    %v2599 = vpop.permute.xlu0 %2598
    %2600 = vrot.lane.b32.xlu0 %v2575, 32
    %v2601 = vpop.permute.xlu0 %2600
    %2602 = vrot.lane.b32.xlu0 %v2578, 32
    %v2603 = vpop.permute.xlu0 %2602
    %2612 = vrot.lane.b32.xlu0 %v2581, 64
    %v2613 = vpop.permute.xlu0 %2612
    %2614 = vrot.lane.b32.xlu0 %v2584, 64
    %v2615 = vpop.permute.xlu0 %2614
    %2616 = vrot.lane.b32.xlu0 %v2587, 64
    %v2617 = vpop.permute.xlu0 %2616
    %2618 = vrot.lane.b32.xlu0 %v2590, 64
    %v2619 = vpop.permute.xlu0 %2618
    %v2624 = vsel %vm1081, %v2557, %v2597
    %v2625 = vsel %vm1081, %v2560, %v2599
    %v2626 = vsel %vm1081, %v2563, %v2601
    %v2627 = vsel %vm1081, %v2566, %v2603
    %v2628 = vsel %vm1090, %v2624, %v2613
    %v2629 = vsel %vm1090, %v2625, %v2615
    %v2630 = vsel %vm1090, %v2626, %v2617
    %v2631 = vsel %vm1090, %v2627, %v2619
    %v2633 = vsel %vm1102, %v2628, 0
    %v2636 = vsel %vm1102, %v2629, 0
    %v2639 = vsel %vm1102, %v2630, 0
    %v2642 = vsel %vm1102, %v2631, 0
    %2644 = vmatpush.msra.mxu0 0.0
    %2645 = vmatpush.msra.mxu0 0.0
    %2646 = vmatpush.msra.mxu0 0.0
    %2647 = vmatpush.msra.mxu0 0.0
    %2648 = vmatpush.msra.mxu0 %v143
    %2649 = vmatpush.msra.mxu0 %v142
    %2650 = vmatpush.msra.mxu0 %v141
    %2651 = vmatpush.msra.mxu0 %v140
    %2652 = vmatpush.msra.mxu0 %v139
    %2653 = vmatpush.msra.mxu0 %v138
    %2654 = vmatpush.msra.mxu0 %v137
    %2655 = vmatpush.msra.mxu0 %v136
    %2656 = vmatpush.msra.mxu0 %v135
    %2657 = vmatpush.msra.mxu0 %v134
    %2658 = vmatpush.msra.mxu0 %v133
    %2659 = vmatpush.msra.mxu0 %v132
    %2660 = vmatmul.f32.gmra.mxu0 %v2633
    %v2661 = vpop.f32.mrf.mxu0
    %v2662 = vadd.f32 %v1350, %v2661
    %2663 = vmatmul.f32.gmra.mxu0 %v2636
    %v2664 = vpop.f32.mrf.mxu0
    %v2665 = vadd.f32 %v1350, %v2664
    %2666 = vmatmul.f32.gmra.mxu0 %v2639
    %v2667 = vpop.f32.mrf.mxu0
    %v2668 = vadd.f32 %v1350, %v2667
    %2669 = vmatmul.f32.gmra.mxu0 %v2642
    %v2670 = vpop.f32.mrf.mxu0
    %v2671 = vadd.f32 %v1350, %v2670
    %2672 = vdwg.mxu0
    %v2673 = vmax.f32 %v2662, 0.0
    %v2674 = vmax.f32 %v2665, 0.0
    %v2675 = vmax.f32 %v2668, 0.0
    %v2676 = vmax.f32 %v2671, 0.0
    %v2681 = vrot.slane %v2673, 7
    %v2682 = vrot.slane %v2674, 7
    %v2683 = vsel %vm228, %v2681, %v2682
    %v2684 = vrot.slane %v2675, 7
    %v2685 = vsel %vm228, %v2682, %v2684
    %v2686 = vrot.slane %v2676, 7
    %v2687 = vsel %vm228, %v2684, %v2686
    %v2693 = vsel %vm228, 0.0, %v2681
    %v2694 = vsel %vm228, %v2686, 0.0
    %v2697 = vrot.slane %v2693, 1
    %v2698 = vrot.slane %v2683, 1
    %v2699 = vsel %vm277, %v2697, %v2698
    %v2700 = vrot.slane %v2685, 1
    %v2701 = vsel %vm277, %v2698, %v2700
    %v2702 = vrot.slane %v2687, 1
    %v2703 = vsel %vm277, %v2700, %v2702
    %v2704 = vrot.slane %v2694, 1
    %v2705 = vsel %vm277, %v2702, %v2704
    %2706 = vrot.lane.b32.xlu0 %v2699, 48
    %v2707 = vpop.permute.xlu0 %2706
    %2708 = vrot.lane.b32.xlu0 %v2701, 48
    %v2709 = vpop.permute.xlu0 %2708
    %2710 = vrot.lane.b32.xlu0 %v2703, 48
    %v2711 = vpop.permute.xlu0 %2710
    %2712 = vrot.lane.b32.xlu0 %v2705, 48
    %v2713 = vpop.permute.xlu0 %2712
    %v2718 = vrot.slane %v2693, 2
    %v2719 = vrot.slane %v2683, 2
    %v2720 = vsel %vm360, %v2718, %v2719
    %v2721 = vrot.slane %v2685, 2
    %v2722 = vsel %vm360, %v2719, %v2721
    %v2723 = vrot.slane %v2687, 2
    %v2724 = vsel %vm360, %v2721, %v2723
    %v2725 = vrot.slane %v2694, 2
    %v2726 = vsel %vm360, %v2723, %v2725
    %2727 = vrot.lane.b32.xlu0 %v2720, 96
    %v2728 = vpop.permute.xlu0 %2727
    %2729 = vrot.lane.b32.xlu0 %v2722, 96
    %v2730 = vpop.permute.xlu0 %2729
    %2731 = vrot.lane.b32.xlu0 %v2724, 96
    %v2732 = vpop.permute.xlu0 %2731
    %2733 = vrot.lane.b32.xlu0 %v2726, 96
    %v2734 = vpop.permute.xlu0 %2733
    %v2739 = vsel %vm881, %v2693, %v2707
    %v2740 = vsel %vm881, %v2683, %v2709
    %v2741 = vsel %vm881, %v2685, %v2711
    %v2742 = vsel %vm881, %v2687, %v2713
    %v2743 = vsel %vm1102, %v2739, %v2728
    %v2744 = vsel %vm1102, %v2740, %v2730
    %v2745 = vsel %vm1102, %v2741, %v2732
    %v2746 = vsel %vm1102, %v2742, %v2734
    %v2747 = vsel %vm1470, %v2728, 0
    %v2749 = vsel %vm1470, %v2730, 0
    %v2751 = vsel %vm1470, %v2732, 0
    %v2753 = vsel %vm1470, %v2734, 0
    %2755 = vmatpush.msra.mxu0 %v160
    %2756 = vmatpush.msra.mxu0 %v159
    %2757 = vmatpush.msra.mxu0 %v158
    %2758 = vmatpush.msra.mxu0 %v157
    %2759 = vmatpush.msra.mxu0 %v156
    %2760 = vmatpush.msra.mxu0 %v155
    %2761 = vmatpush.msra.mxu0 %v154
    %2762 = vmatpush.msra.mxu0 %v153
    %2763 = vmatpush.msra.mxu0 %v152
    %2764 = vmatpush.msra.mxu0 %v151
    %2765 = vmatpush.msra.mxu0 %v150
    %2766 = vmatpush.msra.mxu0 %v149
    %2767 = vmatpush.msra.mxu0 %v148
    %2768 = vmatpush.msra.mxu0 %v147
    %2769 = vmatpush.msra.mxu0 %v146
    %2770 = vmatpush.msra.mxu0 %v145
    %2771 = vmatmul.f32.gmra.mxu0 %v2743
    %v2772 = vpop.f32.mrf.mxu0
    %v2773 = vadd.f32 %v1468, %v2772
    %2774 = vmatmul.f32.gmra.mxu0 %v2744
    %v2775 = vpop.f32.mrf.mxu0
    %v2776 = vadd.f32 %v1468, %v2775
    %2777 = vmatmul.f32.gmra.mxu0 %v2745
    %v2778 = vpop.f32.mrf.mxu0
    %v2779 = vadd.f32 %v1468, %v2778
    %2780 = vmatmul.f32.gmra.mxu0 %v2746
    %v2781 = vpop.f32.mrf.mxu0
    %v2782 = vadd.f32 %v1468, %v2781
    %2783 = vdwg.mxu0
    %2784 = vmatpush.msra.mxu0 0.0
    %2785 = vmatpush.msra.mxu0 0.0
    %2786 = vmatpush.msra.mxu0 0.0
    %2787 = vmatpush.msra.mxu0 0.0
    %2788 = vmatpush.msra.mxu0 0.0
    %2789 = vmatpush.msra.mxu0 0.0
    %2790 = vmatpush.msra.mxu0 0.0
    %2791 = vmatpush.msra.mxu0 0.0
    %2792 = vmatpush.msra.mxu0 0.0
    %2793 = vmatpush.msra.mxu0 0.0
    %2794 = vmatpush.msra.mxu0 0.0
    %2795 = vmatpush.msra.mxu0 0.0
    %2796 = vmatpush.msra.mxu0 0.0
    %2797 = vmatpush.msra.mxu0 0.0
    %2798 = vmatpush.msra.mxu0 %v162
    %2799 = vmatpush.msra.mxu0 %v161
    %2800 = vmatmul.f32.gmra.mxu0 %v2747
    %v2801 = vpop.f32.mrf.mxu0
    %v2802 = vadd.f32 %v2773, %v2801
    %2803 = vmatmul.f32.gmra.mxu0 %v2749
    %v2804 = vpop.f32.mrf.mxu0
    %v2805 = vadd.f32 %v2776, %v2804
    %2806 = vmatmul.f32.gmra.mxu0 %v2751
    %v2807 = vpop.f32.mrf.mxu0
    %v2808 = vadd.f32 %v2779, %v2807
    %2809 = vmatmul.f32.gmra.mxu0 %v2753
    %v2810 = vpop.f32.mrf.mxu0
    %v2811 = vadd.f32 %v2782, %v2810
    %2812 = vdwg.mxu0
    %2817 = vrot.lane.b32.xlu0 %v2662, 80
    %v2818 = vpop.permute.xlu0 %2817
    %2819 = vrot.lane.b32.xlu0 %v2665, 80
    %v2820 = vpop.permute.xlu0 %2819
    %2821 = vrot.lane.b32.xlu0 %v2668, 80
    %v2822 = vpop.permute.xlu0 %2821
    %2823 = vrot.lane.b32.xlu0 %v2671, 80
    %v2824 = vpop.permute.xlu0 %2823
    %v2829 = vadd.f32 %v2802, %v2818
    %v2830 = vadd.f32 %v2805, %v2820
    %v2831 = vadd.f32 %v2808, %v2822
    %v2832 = vadd.f32 %v2811, %v2824
    %v2833 = vmax.f32 %v2829, 0.0
    %v2834 = vmax.f32 %v2830, 0.0
    %v2835 = vmax.f32 %v2831, 0.0
    %v2836 = vmax.f32 %v2832, 0.0
    %v2837 = vsel %vm881, %v2833, 0.0
    %v2838 = vsel %vm881, %v2834, 0.0
    %v2839 = vadd.f32 %v2837, %v2838
    %v2840 = vsel %vm881, %v2835, 0.0
    %v2841 = vadd.f32 %v2839, %v2840
    %v2842 = vsel %vm881, %v2836, 0.0
    %v2843 = vadd.f32 %v2841, %v2842
    %v2844 = vrot.slane %v2843, 4
    %v2845 = vadd.f32 %v2843, %v2844
    %v2846 = vrot.slane %v2845, 2
    %v2847 = vadd.f32 %v2845, %v2846
    %v2848 = vrot.slane %v2847, 1
    %v2849 = vadd.f32 %v2847, %v2848
    %v2850 = vmul.f32 %v2849, %v1580
    %v2852 = vsel %vm881, %v2850, 0
    %2854 = vmatpush.msra.mxu0 0.0
    %2855 = vmatpush.msra.mxu0 0.0
    %2856 = vmatpush.msra.mxu0 0.0
    %2857 = vmatpush.msra.mxu0 0.0
    %2858 = vmatpush.msra.mxu0 0.0
    %2859 = vmatpush.msra.mxu0 0.0
    %2860 = vmatpush.msra.mxu0 0.0
    %2861 = vmatpush.msra.mxu0 0.0
    %2862 = vmatpush.msra.mxu0 0.0
    %2863 = vmatpush.msra.mxu0 0.0
    %2864 = vmatpush.msra.mxu0 %v169
    %2865 = vmatpush.msra.mxu0 %v168
    %2866 = vmatpush.msra.mxu0 %v167
    %2867 = vmatpush.msra.mxu0 %v166
    %2868 = vmatpush.msra.mxu0 %v165
    %2869 = vmatpush.msra.mxu0 %v164
    %2870 = vmatmul.f32.gmra.mxu0 %v2852
    %v2871 = vpop.f32.mrf.mxu0
    %v2872 = vadd.f32 %v170, %v2871
    %2873 = vdwg.mxu0
    %v2874 = vmax.f32 %v2872, 0.0
    %v2876 = vsel %vm1090, %v2874, 0
    %2878 = vmatpush.msra.mxu0 0.0
    %2879 = vmatpush.msra.mxu0 0.0
    %2880 = vmatpush.msra.mxu0 0.0
    %2881 = vmatpush.msra.mxu0 0.0
    %2882 = vmatpush.msra.mxu0 0.0
    %2883 = vmatpush.msra.mxu0 0.0
    %2884 = vmatpush.msra.mxu0 0.0
    %2885 = vmatpush.msra.mxu0 0.0
    %2886 = vmatpush.msra.mxu0 %v178
    %2887 = vmatpush.msra.mxu0 %v177
    %2888 = vmatpush.msra.mxu0 %v176
    %2889 = vmatpush.msra.mxu0 %v175
    %2890 = vmatpush.msra.mxu0 %v174
    %2891 = vmatpush.msra.mxu0 %v173
    %2892 = vmatpush.msra.mxu0 %v172
    %2893 = vmatpush.msra.mxu0 %v171
    %2894 = vmatmul.f32.gmra.mxu0 %v2876
    %v2895 = vpop.f32.mrf.mxu0
    %v2896 = vadd.f32 %v179, %v2895
    %2897 = vdwg.mxu0
    %v2899 = vrot.slane %v2896, 7
    %v2901 = vsel %vm228, %v1627, %v2899
    %vm2902 = vcmask 254976
    %2903 = vst.msk [vmem:[#allocation2] sm:$0x3] %vm2902, %v2901
    // Predicated region
    $region70: #{cnn_forward.1} parent=1 // pred_check
      _
    $region71: #{cnn_forward.1} parent=1 // pred_check_branch
      %2905 = sbr.rel (0) target = $region73
    $region72: #{cnn_forward.1} parent=1 // pred_region
      %2907 = vsyncadd [#allocation3], 0
      %s2909 = sshll.u32 [#allocation2], 4
      %s2910 = int_to_ptr.vmem [resolvable:$true] %s2909
      %s2911 = sshll.u32 %s17, 4
      %s2912 = int_to_ptr.hbm [resolvable:$true] %s2911
      %2914 = dma.vmem_to_hbm [thread:$0]  %s2910, 32, %s2912, [#allocation3]
    $region73: #{cnn_forward.1} parent=1 // pred_fallthru
      _
    // Predicated region
    $region74: #{cnn_forward.1} parent=1 // pred_check
      _
    $region75: #{cnn_forward.1} parent=1 // pred_check_branch
      %2916 = sbr.rel (0) target = $region77
    $region76: #{cnn_forward.1} parent=1 // pred_region
      %2918 = dma.done [#allocation3], 32
    $region77: #{cnn_forward.1} parent=1 // pred_fallthru
      _
    %2919 = vsyncpa [#allocation3], 1

</llo_original>
